<compile_context>
chip_gen: v6e
topology: v6e:2x2x1
jax: 0.10.0
libtpu: 0.0.40
codegen_flags: <defaults>
</compile_context>

<pallas_src>
import jax
import jax.numpy as jnp
from jax import lax
from jax.experimental import pallas as pl
from jax.experimental.pallas import tpu as pltpu


def _round_up(x, m):
    return (x + m - 1) // m * m


def _choose_tc(T, Bp, Hp, max_tc=32, max_gates_bytes=2 << 20):
    """Largest divisor of T that is <= max_tc and keeps the hoisted input
    projection (Tc*Bp, 4Hp) f32 slab under max_gates_bytes of VMEM."""
    per_step = Bp * 4 * Hp * 4  # bytes of gates_x per timestep
    cap = max(1, min(max_tc, max_gates_bytes // max(per_step, 1)))
    tc = 1
    for cand in range(1, min(T, cap) + 1):
        if T % cand == 0:
            tc = cand
    return tc


def _lstm_kernel(x_ref, wih_ref, whh_ref, b_ref, wfc_ref, bfc_ref,
                 out_ref, h_scr, c_scr):
    """One grid step = one Tc-timestep chunk. h/c persist in VMEM scratch."""
    tb = pl.program_id(0)
    Tc, Bp, I = x_ref.shape
    Hp = h_scr.shape[1]

    @pl.when(tb == 0)
    def _():
        h_scr[...] = jnp.zeros_like(h_scr)
        c_scr[...] = jnp.zeros_like(c_scr)

    # Hoisted input projection: one (Tc*Bp, I) @ (I, 4Hp) MXU matmul per chunk
    # (+ pre-summed bias) instead of Tc tiny matmuls on the serial path.
    x_blk = x_ref[...].reshape(Tc * Bp, I)
    gates_x = (jnp.dot(x_blk, wih_ref[...], preferred_element_type=jnp.float32)
               + b_ref[...])                                   # (Tc*Bp, 4Hp)

    whh = whh_ref[...]                                         # (Hp, 4Hp)
    h = h_scr[...]
    c = c_scr[...]

    # Static (fully unrolled) inner loop over the chunk; only h@W_hh per step.
    for t in range(Tc):
        gates = gates_x[t * Bp:(t + 1) * Bp, :] + jnp.dot(
            h, whh, preferred_element_type=jnp.float32)        # (Bp, 4Hp)
        # Gate order (after wrapper reorder) is [i, f, o, g]: one contiguous
        # sigmoid slab + one tanh slab; all slices on 128-lane boundaries.
        ifo = jax.nn.sigmoid(gates[:, :3 * Hp])
        g_g = jnp.tanh(gates[:, 3 * Hp:])
        i_g = ifo[:, 0 * Hp:1 * Hp]
        f_g = ifo[:, 1 * Hp:2 * Hp]
        o_g = ifo[:, 2 * Hp:3 * Hp]
        c = f_g * c + i_g * g_g
        h = o_g * jnp.tanh(c)

    h_scr[...] = h
    c_scr[...] = c

    # Last chunk: fc head on h_T into a lane-dense (Bp, Op) slab.
    @pl.when(tb == pl.num_programs(0) - 1)
    def _():
        out_ref[...] = (jnp.dot(h, wfc_ref[...],
                                preferred_element_type=jnp.float32)
                        + bfc_ref[...]).astype(out_ref.dtype)


def lstm_model_forward(x, params, *, max_tc=32):
    """x: (batch, seq, input_size) float32 -> (batch, output_size)."""
    w_ih, w_hh, b_ih, b_hh, w_fc, b_fc = params
    B, T, I = x.shape
    H = w_hh.shape[1]           # w_hh: (4H, H)
    O = w_fc.shape[0]           # w_fc: (O, H)

    f32 = jnp.float32
    Hp = _round_up(H, 128)      # lane-aligned gate slices
    Op = _round_up(O, 128)      # lane-dense output store
    Bp = _round_up(B, 8)        # sublane-aligned batch
    Tc = _choose_tc(T, Bp, Hp, max_tc)  # timesteps per grid iteration

    # Reorder gate blocks from PyTorch's [i, f, g, o] to [i, f, o, g] and pad
    # each gate's H rows to Hp with zeros (exact: padded units stay 0, since
    # gates at padded lanes evaluate on c=0 / g=0).
    def prep_gate_mat(w):                    # w: (4H, K) -> (K, 4Hp)
        i, f, g, o = jnp.split(w.astype(f32), 4, axis=0)
        parts = [jnp.pad(p, ((0, Hp - H), (0, 0))) for p in (i, f, o, g)]
        return jnp.concatenate(parts, axis=0).T

    def prep_gate_vec(v):                    # v: (4H,) -> (1, 4Hp)
        i, f, g, o = jnp.split(v.astype(f32), 4, axis=0)
        parts = [jnp.pad(p, (0, Hp - H)) for p in (i, f, o, g)]
        return jnp.concatenate(parts, axis=0)[None, :]

    wih_t = prep_gate_mat(w_ih)                                        # (I, 4Hp)
    whh_t = prep_gate_mat(jnp.pad(w_hh.astype(f32),
                                  ((0, 0), (0, Hp - H))))              # (Hp, 4Hp)
    b_sum = prep_gate_vec(b_ih + b_hh)                                 # (1, 4Hp)

    wfc_t = jnp.pad(w_fc.astype(f32), ((0, Op - O), (0, Hp - H))).T    # (Hp, Op)
    bfc2 = jnp.pad(b_fc.astype(f32), (0, Op - O))[None, :]             # (1, Op)

    # Time-major; pad batch to a sublane multiple (padded rows are discarded).
    x_tm = jnp.transpose(x.astype(f32), (1, 0, 2))                     # (T, B, I)
    x_tm = jnp.pad(x_tm, ((0, 0), (0, Bp - B), (0, 0)))                # (T, Bp, I)

    grid_spec = pltpu.PrefetchScalarGridSpec(
        num_scalar_prefetch=0,
        grid=(T // Tc,),
        in_specs=[
            pl.BlockSpec((Tc, Bp, I), lambda tb: (tb, 0, 0)),   # x time-chunk
            pl.BlockSpec((I, 4 * Hp), lambda tb: (0, 0)),       # W_ih^T
            pl.BlockSpec((Hp, 4 * Hp), lambda tb: (0, 0)),      # W_hh^T
            pl.BlockSpec((1, 4 * Hp), lambda tb: (0, 0)),       # b_ih + b_hh
            pl.BlockSpec((Hp, Op), lambda tb: (0, 0)),          # W_fc^T
            pl.BlockSpec((1, Op), lambda tb: (0, 0)),           # b_fc
        ],
        out_specs=pl.BlockSpec((Bp, Op), lambda tb: (0, 0)),    # resident output
        scratch_shapes=[
            pltpu.VMEM((Bp, Hp), jnp.float32),                  # h state
            pltpu.VMEM((Bp, Hp), jnp.float32),                  # c state
        ],
    )

    out_p = pl.pallas_call(
        _lstm_kernel,
        out_shape=jax.ShapeDtypeStruct((Bp, Op), jnp.float32),
        grid_spec=grid_spec,
        compiler_params=pltpu.CompilerParams(
            dimension_semantics=("arbitrary",)),   # sequential recurrence
    )(x_tm, wih_t, whh_t, b_sum, wfc_t, bfc2)

    return out_p[:B, :O]


def init_params(key, input_size, hidden_size, output_size):
    """Deterministic init, PyTorch-style uniform(-1/sqrt(H), 1/sqrt(H))."""
    ks = jax.random.split(key, 6)
    k_lstm = 1.0 / jnp.sqrt(hidden_size)
    k_fc = 1.0 / jnp.sqrt(hidden_size)
    w_ih = jax.random.uniform(ks[0], (4 * hidden_size, input_size),
                              jnp.float32, -k_lstm, k_lstm)
    w_hh = jax.random.uniform(ks[1], (4 * hidden_size, hidden_size),
                              jnp.float32, -k_lstm, k_lstm)
    b_ih = jax.random.uniform(ks[2], (4 * hidden_size,),
                              jnp.float32, -k_lstm, k_lstm)
    b_hh = jax.random.uniform(ks[3], (4 * hidden_size,),
                              jnp.float32, -k_lstm, k_lstm)
    w_fc = jax.random.uniform(ks[4], (output_size, hidden_size),
                              jnp.float32, -k_fc, k_fc)
    b_fc = jax.random.uniform(ks[5], (output_size,),
                              jnp.float32, -k_fc, k_fc)
    return (w_ih, w_hh, b_ih, b_hh, w_fc, b_fc)


def reference_forward(x, params):
    """Pure-JAX reference matching torch.nn.LSTM(batch_first=True) + Linear."""
    w_ih, w_hh, b_ih, b_hh, w_fc, b_fc = params
    B = x.shape[0]
    H = w_hh.shape[1]

    def step(carry, x_t):
        h, c = carry
        gates = x_t @ w_ih.T + b_ih + h @ w_hh.T + b_hh
        i = jax.nn.sigmoid(gates[:, 0 * H:1 * H])
        f = jax.nn.sigmoid(gates[:, 1 * H:2 * H])
        g = jnp.tanh(gates[:, 2 * H:3 * H])
        o = jax.nn.sigmoid(gates[:, 3 * H:4 * H])
        c = f * c + i * g
        h = o * jnp.tanh(c)
        return (h, c), h

    h0 = jnp.zeros((B, H), jnp.float32)
    c0 = jnp.zeros((B, H), jnp.float32)
    (h_T, _), _ = lax.scan(step, (h0, c0), jnp.transpose(x, (1, 0, 2)))
    return h_T @ w_fc.T + b_fc


if __name__ == "__main__":
    # Shapes implied by the module's forward: x is (batch, seq, input_size)
    batch, seq, input_size, hidden_size, output_size = 2, 8, 16, 32, 8

    key = jax.random.PRNGKey(0)
    k_x, k_p = jax.random.split(key)
    x = jax.random.normal(k_x, (batch, seq, input_size), jnp.float32)
    params = init_params(k_p, input_size, hidden_size, output_size)

    out = lstm_model_forward(x, params)
    out = jax.block_until_ready(out)

    ref = reference_forward(x, params)
    assert out.shape == (batch, output_size)
    assert jnp.allclose(out, ref, atol=1e-5, rtol=1e-5), "mismatch vs reference"

    print("KERNEL_OK")
</pallas_src>

<mosaic_0001>
module attributes {stable_mosaic.version = 11 : i64} {
  func.func @_lstm_kernel(%arg0: i32, %arg1: memref<8x8x16xf32, #tpu.memory_space<vmem>>, %arg2: memref<16x512xf32, #tpu.memory_space<vmem>>, %arg3: memref<128x512xf32, #tpu.memory_space<vmem>>, %arg4: memref<1x512xf32, #tpu.memory_space<vmem>>, %arg5: memref<128x128xf32, #tpu.memory_space<vmem>>, %arg6: memref<1x128xf32, #tpu.memory_space<vmem>>, %arg7: memref<8x128xf32, #tpu.memory_space<vmem>>, %arg8: memref<8x128xf32, #tpu.memory_space<vmem>>, %arg9: memref<8x128xf32, #tpu.memory_space<vmem>>) attributes {dimension_semantics = [#tpu.dimension_semantics<arbitrary>], iteration_bounds = array<i64: 1>, scalar_prefetch = 0 : i64, scratch_operands = 2 : i64, tpu.core_type = #tpu.core_type<tc>, window_params = [{transform_indices = @transform_0, window_bounds = array<i64: 8, 8, 16>}, {pipeline_mode = #tpu.pipeline_mode<synchronous>, transform_indices = @transform_1, window_bounds = array<i64: 16, 512>}, {pipeline_mode = #tpu.pipeline_mode<synchronous>, transform_indices = @transform_2, window_bounds = array<i64: 128, 512>}, {pipeline_mode = #tpu.pipeline_mode<synchronous>, transform_indices = @transform_3, window_bounds = array<i64: 1, 512>}, {pipeline_mode = #tpu.pipeline_mode<synchronous>, transform_indices = @transform_4, window_bounds = array<i64: 128, 128>}, {pipeline_mode = #tpu.pipeline_mode<synchronous>, transform_indices = @transform_5, window_bounds = array<i64: 1, 128>}, {pipeline_mode = #tpu.pipeline_mode<synchronous>, transform_indices = @transform_6, window_bounds = array<i64: 8, 128>}]} {
    %c0_i32 = arith.constant 0 : i32
    %0 = arith.cmpi eq, %arg0, %c0_i32 : i32
    %1 = arith.extui %0 : i1 to i32
    %c0_i32_0 = arith.constant 0 : i32
    %2 = arith.cmpi ne, %1, %c0_i32_0 : i32
    scf.if %2 {
      %cst_35 = arith.constant 0.000000e+00 : f32
      %170 = vector.broadcast %cst_35 : f32 to vector<8x128xf32>
      %c0_36 = arith.constant 0 : index
      %c0_37 = arith.constant 0 : index
      %171 = vector.load %arg8[%c0_36, %c0_37] : memref<8x128xf32, #tpu.memory_space<vmem>>, vector<8x128xf32>
      tpu.vector_store %arg8[%c0_36, %c0_37], %170 {strides = array<i32>} : memref<8x128xf32, #tpu.memory_space<vmem>>, vector<8x128xf32>,
      %cst_38 = arith.constant 0.000000e+00 : f32
      %172 = vector.broadcast %cst_38 : f32 to vector<8x128xf32>
      %c0_39 = arith.constant 0 : index
      %c0_40 = arith.constant 0 : index
      %173 = vector.load %arg9[%c0_39, %c0_40] : memref<8x128xf32, #tpu.memory_space<vmem>>, vector<8x128xf32>
      tpu.vector_store %arg9[%c0_39, %c0_40], %172 {strides = array<i32>} : memref<8x128xf32, #tpu.memory_space<vmem>>, vector<8x128xf32>,
    } else {
    }
    %c0 = arith.constant 0 : index
    %c0_1 = arith.constant 0 : index
    %c0_2 = arith.constant 0 : index
    %3 = vector.load %arg1[%c0, %c0_1, %c0_2] : memref<8x8x16xf32, #tpu.memory_space<vmem>>, vector<8x8x16xf32>
    %4 = vector.shape_cast %3 : vector<8x8x16xf32> to vector<64x16xf32>
    %c0_3 = arith.constant 0 : index
    %c0_4 = arith.constant 0 : index
    %5 = vector.load %arg2[%c0_3, %c0_4] : memref<16x512xf32, #tpu.memory_space<vmem>>, vector<16x512xf32>
    %cst = arith.constant dense<0.000000e+00> : vector<64x512xf32>
    %6 = tpu.matmul %4, %5, %cst {dimension_numbers = #tpu.dot_dimension_numbers<[1], [0], [0], [1], [0, 0, 1, 1], [], []>} : vector<64x16xf32>, vector<16x512xf32>, vector<64x512xf32> -> vector<64x512xf32>
    %c0_5 = arith.constant 0 : index
    %c0_6 = arith.constant 0 : index
    %7 = vector.load %arg4[%c0_5, %c0_6] : memref<1x512xf32, #tpu.memory_space<vmem>>, vector<1x512xf32>
    %8 = vector.broadcast %7 : vector<1x512xf32> to vector<64x512xf32>
    %9 = arith.addf %6, %8 : vector<64x512xf32>
    %c0_7 = arith.constant 0 : index
    %c0_8 = arith.constant 0 : index
    %10 = vector.load %arg3[%c0_7, %c0_8] : memref<128x512xf32, #tpu.memory_space<vmem>>, vector<128x512xf32>
    %c0_9 = arith.constant 0 : index
    %c0_10 = arith.constant 0 : index
    %11 = vector.load %arg8[%c0_9, %c0_10] : memref<8x128xf32, #tpu.memory_space<vmem>>, vector<8x128xf32>
    %c0_11 = arith.constant 0 : index
    %c0_12 = arith.constant 0 : index
    %12 = vector.load %arg9[%c0_11, %c0_12] : memref<8x128xf32, #tpu.memory_space<vmem>>, vector<8x128xf32>
    %13 = vector.extract_strided_slice %9 {offsets = [0, 0], sizes = [8, 512], strides = [1, 1]} : vector<64x512xf32> to vector<8x512xf32>
    %cst_13 = arith.constant dense<0.000000e+00> : vector<8x512xf32>
    %14 = tpu.matmul %11, %10, %cst_13 {dimension_numbers = #tpu.dot_dimension_numbers<[1], [0], [0], [1], [0, 0, 1, 1], [], []>} : vector<8x128xf32>, vector<128x512xf32>, vector<8x512xf32> -> vector<8x512xf32>
    %15 = arith.addf %13, %14 : vector<8x512xf32>
    %16 = vector.extract_strided_slice %15 {offsets = [0, 0], sizes = [8, 384], strides = [1, 1]} : vector<8x512xf32> to vector<8x384xf32>
    %17 = arith.negf %16 : vector<8x384xf32>
    %18 = math.exp %17 : vector<8x384xf32>
    %cst_14 = arith.constant 1.000000e+00 : f32
    %19 = vector.broadcast %cst_14 : f32 to vector<8x384xf32>
    %20 = arith.addf %19, %18 : vector<8x384xf32>
    %21 = arith.divf %19, %20 : vector<8x384xf32>
    %22 = vector.extract_strided_slice %15 {offsets = [0, 384], sizes = [8, 128], strides = [1, 1]} : vector<8x512xf32> to vector<8x128xf32>
    %23 = math.tanh %22 : vector<8x128xf32>
    %24 = vector.extract_strided_slice %21 {offsets = [0, 0], sizes = [8, 128], strides = [1, 1]} : vector<8x384xf32> to vector<8x128xf32>
    %25 = vector.extract_strided_slice %21 {offsets = [0, 128], sizes = [8, 128], strides = [1, 1]} : vector<8x384xf32> to vector<8x128xf32>
    %26 = vector.extract_strided_slice %21 {offsets = [0, 256], sizes = [8, 128], strides = [1, 1]} : vector<8x384xf32> to vector<8x128xf32>
    %27 = arith.mulf %25, %12 : vector<8x128xf32>
    %28 = arith.mulf %24, %23 : vector<8x128xf32>
    %29 = arith.addf %27, %28 : vector<8x128xf32>
    %30 = math.tanh %29 : vector<8x128xf32>
    %31 = arith.mulf %26, %30 : vector<8x128xf32>
    %32 = vector.extract_strided_slice %9 {offsets = [8, 0], sizes = [8, 512], strides = [1, 1]} : vector<64x512xf32> to vector<8x512xf32>
    %cst_15 = arith.constant dense<0.000000e+00> : vector<8x512xf32>
    %33 = tpu.matmul %31, %10, %cst_15 {dimension_numbers = #tpu.dot_dimension_numbers<[1], [0], [0], [1], [0, 0, 1, 1], [], []>} : vector<8x128xf32>, vector<128x512xf32>, vector<8x512xf32> -> vector<8x512xf32>
    %34 = arith.addf %32, %33 : vector<8x512xf32>
    %35 = vector.extract_strided_slice %34 {offsets = [0, 0], sizes = [8, 384], strides = [1, 1]} : vector<8x512xf32> to vector<8x384xf32>
    %36 = arith.negf %35 : vector<8x384xf32>
    %37 = math.exp %36 : vector<8x384xf32>
    %cst_16 = arith.constant 1.000000e+00 : f32
    %38 = vector.broadcast %cst_16 : f32 to vector<8x384xf32>
    %39 = arith.addf %38, %37 : vector<8x384xf32>
    %40 = arith.divf %38, %39 : vector<8x384xf32>
    %41 = vector.extract_strided_slice %34 {offsets = [0, 384], sizes = [8, 128], strides = [1, 1]} : vector<8x512xf32> to vector<8x128xf32>
    %42 = math.tanh %41 : vector<8x128xf32>
    %43 = vector.extract_strided_slice %40 {offsets = [0, 0], sizes = [8, 128], strides = [1, 1]} : vector<8x384xf32> to vector<8x128xf32>
    %44 = vector.extract_strided_slice %40 {offsets = [0, 128], sizes = [8, 128], strides = [1, 1]} : vector<8x384xf32> to vector<8x128xf32>
    %45 = vector.extract_strided_slice %40 {offsets = [0, 256], sizes = [8, 128], strides = [1, 1]} : vector<8x384xf32> to vector<8x128xf32>
    %46 = arith.mulf %44, %29 : vector<8x128xf32>
    %47 = arith.mulf %43, %42 : vector<8x128xf32>
    %48 = arith.addf %46, %47 : vector<8x128xf32>
    %49 = math.tanh %48 : vector<8x128xf32>
    %50 = arith.mulf %45, %49 : vector<8x128xf32>
    %51 = vector.extract_strided_slice %9 {offsets = [16, 0], sizes = [8, 512], strides = [1, 1]} : vector<64x512xf32> to vector<8x512xf32>
    %cst_17 = arith.constant dense<0.000000e+00> : vector<8x512xf32>
    %52 = tpu.matmul %50, %10, %cst_17 {dimension_numbers = #tpu.dot_dimension_numbers<[1], [0], [0], [1], [0, 0, 1, 1], [], []>} : vector<8x128xf32>, vector<128x512xf32>, vector<8x512xf32> -> vector<8x512xf32>
    %53 = arith.addf %51, %52 : vector<8x512xf32>
    %54 = vector.extract_strided_slice %53 {offsets = [0, 0], sizes = [8, 384], strides = [1, 1]} : vector<8x512xf32> to vector<8x384xf32>
    %55 = arith.negf %54 : vector<8x384xf32>
    %56 = math.exp %55 : vector<8x384xf32>
    %cst_18 = arith.constant 1.000000e+00 : f32
    %57 = vector.broadcast %cst_18 : f32 to vector<8x384xf32>
    %58 = arith.addf %57, %56 : vector<8x384xf32>
    %59 = arith.divf %57, %58 : vector<8x384xf32>
    %60 = vector.extract_strided_slice %53 {offsets = [0, 384], sizes = [8, 128], strides = [1, 1]} : vector<8x512xf32> to vector<8x128xf32>
    %61 = math.tanh %60 : vector<8x128xf32>
    %62 = vector.extract_strided_slice %59 {offsets = [0, 0], sizes = [8, 128], strides = [1, 1]} : vector<8x384xf32> to vector<8x128xf32>
    %63 = vector.extract_strided_slice %59 {offsets = [0, 128], sizes = [8, 128], strides = [1, 1]} : vector<8x384xf32> to vector<8x128xf32>
    %64 = vector.extract_strided_slice %59 {offsets = [0, 256], sizes = [8, 128], strides = [1, 1]} : vector<8x384xf32> to vector<8x128xf32>
    %65 = arith.mulf %63, %48 : vector<8x128xf32>
    %66 = arith.mulf %62, %61 : vector<8x128xf32>
    %67 = arith.addf %65, %66 : vector<8x128xf32>
    %68 = math.tanh %67 : vector<8x128xf32>
    %69 = arith.mulf %64, %68 : vector<8x128xf32>
    %70 = vector.extract_strided_slice %9 {offsets = [24, 0], sizes = [8, 512], strides = [1, 1]} : vector<64x512xf32> to vector<8x512xf32>
    %cst_19 = arith.constant dense<0.000000e+00> : vector<8x512xf32>
    %71 = tpu.matmul %69, %10, %cst_19 {dimension_numbers = #tpu.dot_dimension_numbers<[1], [0], [0], [1], [0, 0, 1, 1], [], []>} : vector<8x128xf32>, vector<128x512xf32>, vector<8x512xf32> -> vector<8x512xf32>
    %72 = arith.addf %70, %71 : vector<8x512xf32>
    %73 = vector.extract_strided_slice %72 {offsets = [0, 0], sizes = [8, 384], strides = [1, 1]} : vector<8x512xf32> to vector<8x384xf32>
    %74 = arith.negf %73 : vector<8x384xf32>
    %75 = math.exp %74 : vector<8x384xf32>
    %cst_20 = arith.constant 1.000000e+00 : f32
    %76 = vector.broadcast %cst_20 : f32 to vector<8x384xf32>
    %77 = arith.addf %76, %75 : vector<8x384xf32>
    %78 = arith.divf %76, %77 : vector<8x384xf32>
    %79 = vector.extract_strided_slice %72 {offsets = [0, 384], sizes = [8, 128], strides = [1, 1]} : vector<8x512xf32> to vector<8x128xf32>
    %80 = math.tanh %79 : vector<8x128xf32>
    %81 = vector.extract_strided_slice %78 {offsets = [0, 0], sizes = [8, 128], strides = [1, 1]} : vector<8x384xf32> to vector<8x128xf32>
    %82 = vector.extract_strided_slice %78 {offsets = [0, 128], sizes = [8, 128], strides = [1, 1]} : vector<8x384xf32> to vector<8x128xf32>
    %83 = vector.extract_strided_slice %78 {offsets = [0, 256], sizes = [8, 128], strides = [1, 1]} : vector<8x384xf32> to vector<8x128xf32>
    %84 = arith.mulf %82, %67 : vector<8x128xf32>
    %85 = arith.mulf %81, %80 : vector<8x128xf32>
    %86 = arith.addf %84, %85 : vector<8x128xf32>
    %87 = math.tanh %86 : vector<8x128xf32>
    %88 = arith.mulf %83, %87 : vector<8x128xf32>
    %89 = vector.extract_strided_slice %9 {offsets = [32, 0], sizes = [8, 512], strides = [1, 1]} : vector<64x512xf32> to vector<8x512xf32>
    %cst_21 = arith.constant dense<0.000000e+00> : vector<8x512xf32>
    %90 = tpu.matmul %88, %10, %cst_21 {dimension_numbers = #tpu.dot_dimension_numbers<[1], [0], [0], [1], [0, 0, 1, 1], [], []>} : vector<8x128xf32>, vector<128x512xf32>, vector<8x512xf32> -> vector<8x512xf32>
    %91 = arith.addf %89, %90 : vector<8x512xf32>
    %92 = vector.extract_strided_slice %91 {offsets = [0, 0], sizes = [8, 384], strides = [1, 1]} : vector<8x512xf32> to vector<8x384xf32>
    %93 = arith.negf %92 : vector<8x384xf32>
    %94 = math.exp %93 : vector<8x384xf32>
    %cst_22 = arith.constant 1.000000e+00 : f32
    %95 = vector.broadcast %cst_22 : f32 to vector<8x384xf32>
    %96 = arith.addf %95, %94 : vector<8x384xf32>
    %97 = arith.divf %95, %96 : vector<8x384xf32>
    %98 = vector.extract_strided_slice %91 {offsets = [0, 384], sizes = [8, 128], strides = [1, 1]} : vector<8x512xf32> to vector<8x128xf32>
    %99 = math.tanh %98 : vector<8x128xf32>
    %100 = vector.extract_strided_slice %97 {offsets = [0, 0], sizes = [8, 128], strides = [1, 1]} : vector<8x384xf32> to vector<8x128xf32>
    %101 = vector.extract_strided_slice %97 {offsets = [0, 128], sizes = [8, 128], strides = [1, 1]} : vector<8x384xf32> to vector<8x128xf32>
    %102 = vector.extract_strided_slice %97 {offsets = [0, 256], sizes = [8, 128], strides = [1, 1]} : vector<8x384xf32> to vector<8x128xf32>
    %103 = arith.mulf %101, %86 : vector<8x128xf32>
    %104 = arith.mulf %100, %99 : vector<8x128xf32>
    %105 = arith.addf %103, %104 : vector<8x128xf32>
    %106 = math.tanh %105 : vector<8x128xf32>
    %107 = arith.mulf %102, %106 : vector<8x128xf32>
    %108 = vector.extract_strided_slice %9 {offsets = [40, 0], sizes = [8, 512], strides = [1, 1]} : vector<64x512xf32> to vector<8x512xf32>
    %cst_23 = arith.constant dense<0.000000e+00> : vector<8x512xf32>
    %109 = tpu.matmul %107, %10, %cst_23 {dimension_numbers = #tpu.dot_dimension_numbers<[1], [0], [0], [1], [0, 0, 1, 1], [], []>} : vector<8x128xf32>, vector<128x512xf32>, vector<8x512xf32> -> vector<8x512xf32>
    %110 = arith.addf %108, %109 : vector<8x512xf32>
    %111 = vector.extract_strided_slice %110 {offsets = [0, 0], sizes = [8, 384], strides = [1, 1]} : vector<8x512xf32> to vector<8x384xf32>
    %112 = arith.negf %111 : vector<8x384xf32>
    %113 = math.exp %112 : vector<8x384xf32>
    %cst_24 = arith.constant 1.000000e+00 : f32
    %114 = vector.broadcast %cst_24 : f32 to vector<8x384xf32>
    %115 = arith.addf %114, %113 : vector<8x384xf32>
    %116 = arith.divf %114, %115 : vector<8x384xf32>
    %117 = vector.extract_strided_slice %110 {offsets = [0, 384], sizes = [8, 128], strides = [1, 1]} : vector<8x512xf32> to vector<8x128xf32>
    %118 = math.tanh %117 : vector<8x128xf32>
    %119 = vector.extract_strided_slice %116 {offsets = [0, 0], sizes = [8, 128], strides = [1, 1]} : vector<8x384xf32> to vector<8x128xf32>
    %120 = vector.extract_strided_slice %116 {offsets = [0, 128], sizes = [8, 128], strides = [1, 1]} : vector<8x384xf32> to vector<8x128xf32>
    %121 = vector.extract_strided_slice %116 {offsets = [0, 256], sizes = [8, 128], strides = [1, 1]} : vector<8x384xf32> to vector<8x128xf32>
    %122 = arith.mulf %120, %105 : vector<8x128xf32>
    %123 = arith.mulf %119, %118 : vector<8x128xf32>
    %124 = arith.addf %122, %123 : vector<8x128xf32>
    %125 = math.tanh %124 : vector<8x128xf32>
    %126 = arith.mulf %121, %125 : vector<8x128xf32>
    %127 = vector.extract_strided_slice %9 {offsets = [48, 0], sizes = [8, 512], strides = [1, 1]} : vector<64x512xf32> to vector<8x512xf32>
    %cst_25 = arith.constant dense<0.000000e+00> : vector<8x512xf32>
    %128 = tpu.matmul %126, %10, %cst_25 {dimension_numbers = #tpu.dot_dimension_numbers<[1], [0], [0], [1], [0, 0, 1, 1], [], []>} : vector<8x128xf32>, vector<128x512xf32>, vector<8x512xf32> -> vector<8x512xf32>
    %129 = arith.addf %127, %128 : vector<8x512xf32>
    %130 = vector.extract_strided_slice %129 {offsets = [0, 0], sizes = [8, 384], strides = [1, 1]} : vector<8x512xf32> to vector<8x384xf32>
    %131 = arith.negf %130 : vector<8x384xf32>
    %132 = math.exp %131 : vector<8x384xf32>
    %cst_26 = arith.constant 1.000000e+00 : f32
    %133 = vector.broadcast %cst_26 : f32 to vector<8x384xf32>
    %134 = arith.addf %133, %132 : vector<8x384xf32>
    %135 = arith.divf %133, %134 : vector<8x384xf32>
    %136 = vector.extract_strided_slice %129 {offsets = [0, 384], sizes = [8, 128], strides = [1, 1]} : vector<8x512xf32> to vector<8x128xf32>
    %137 = math.tanh %136 : vector<8x128xf32>
    %138 = vector.extract_strided_slice %135 {offsets = [0, 0], sizes = [8, 128], strides = [1, 1]} : vector<8x384xf32> to vector<8x128xf32>
    %139 = vector.extract_strided_slice %135 {offsets = [0, 128], sizes = [8, 128], strides = [1, 1]} : vector<8x384xf32> to vector<8x128xf32>
    %140 = vector.extract_strided_slice %135 {offsets = [0, 256], sizes = [8, 128], strides = [1, 1]} : vector<8x384xf32> to vector<8x128xf32>
    %141 = arith.mulf %139, %124 : vector<8x128xf32>
    %142 = arith.mulf %138, %137 : vector<8x128xf32>
    %143 = arith.addf %141, %142 : vector<8x128xf32>
    %144 = math.tanh %143 : vector<8x128xf32>
    %145 = arith.mulf %140, %144 : vector<8x128xf32>
    %146 = vector.extract_strided_slice %9 {offsets = [56, 0], sizes = [8, 512], strides = [1, 1]} : vector<64x512xf32> to vector<8x512xf32>
    %cst_27 = arith.constant dense<0.000000e+00> : vector<8x512xf32>
    %147 = tpu.matmul %145, %10, %cst_27 {dimension_numbers = #tpu.dot_dimension_numbers<[1], [0], [0], [1], [0, 0, 1, 1], [], []>} : vector<8x128xf32>, vector<128x512xf32>, vector<8x512xf32> -> vector<8x512xf32>
    %148 = arith.addf %146, %147 : vector<8x512xf32>
    %149 = vector.extract_strided_slice %148 {offsets = [0, 0], sizes = [8, 384], strides = [1, 1]} : vector<8x512xf32> to vector<8x384xf32>
    %150 = arith.negf %149 : vector<8x384xf32>
    %151 = math.exp %150 : vector<8x384xf32>
    %cst_28 = arith.constant 1.000000e+00 : f32
    %152 = vector.broadcast %cst_28 : f32 to vector<8x384xf32>
    %153 = arith.addf %152, %151 : vector<8x384xf32>
    %154 = arith.divf %152, %153 : vector<8x384xf32>
    %155 = vector.extract_strided_slice %148 {offsets = [0, 384], sizes = [8, 128], strides = [1, 1]} : vector<8x512xf32> to vector<8x128xf32>
    %156 = math.tanh %155 : vector<8x128xf32>
    %157 = vector.extract_strided_slice %154 {offsets = [0, 0], sizes = [8, 128], strides = [1, 1]} : vector<8x384xf32> to vector<8x128xf32>
    %158 = vector.extract_strided_slice %154 {offsets = [0, 128], sizes = [8, 128], strides = [1, 1]} : vector<8x384xf32> to vector<8x128xf32>
    %159 = vector.extract_strided_slice %154 {offsets = [0, 256], sizes = [8, 128], strides = [1, 1]} : vector<8x384xf32> to vector<8x128xf32>
    %160 = arith.mulf %158, %143 : vector<8x128xf32>
    %161 = arith.mulf %157, %156 : vector<8x128xf32>
    %162 = arith.addf %160, %161 : vector<8x128xf32>
    %163 = math.tanh %162 : vector<8x128xf32>
    %164 = arith.mulf %159, %163 : vector<8x128xf32>
    %c0_29 = arith.constant 0 : index
    %c0_30 = arith.constant 0 : index
    %165 = vector.load %arg8[%c0_29, %c0_30] : memref<8x128xf32, #tpu.memory_space<vmem>>, vector<8x128xf32>
    tpu.vector_store %arg8[%c0_29, %c0_30], %164 {strides = array<i32>} : memref<8x128xf32, #tpu.memory_space<vmem>>, vector<8x128xf32>,
    %c0_31 = arith.constant 0 : index
    %c0_32 = arith.constant 0 : index
    %166 = vector.load %arg9[%c0_31, %c0_32] : memref<8x128xf32, #tpu.memory_space<vmem>>, vector<8x128xf32>
    tpu.vector_store %arg9[%c0_31, %c0_32], %162 {strides = array<i32>} : memref<8x128xf32, #tpu.memory_space<vmem>>, vector<8x128xf32>,
    %c0_i32_33 = arith.constant 0 : i32
    %167 = arith.cmpi eq, %arg0, %c0_i32_33 : i32
    %168 = arith.extui %167 : i1 to i32
    %c0_i32_34 = arith.constant 0 : i32
    %169 = arith.cmpi ne, %168, %c0_i32_34 : i32
    scf.if %169 {
      %c0_35 = arith.constant 0 : index
      %c0_36 = arith.constant 0 : index
      %170 = vector.load %arg5[%c0_35, %c0_36] : memref<128x128xf32, #tpu.memory_space<vmem>>, vector<128x128xf32>
      %cst_37 = arith.constant dense<0.000000e+00> : vector<8x128xf32>
      %171 = tpu.matmul %164, %170, %cst_37 {dimension_numbers = #tpu.dot_dimension_numbers<[1], [0], [0], [1], [0, 0, 1, 1], [], []>} : vector<8x128xf32>, vector<128x128xf32>, vector<8x128xf32> -> vector<8x128xf32>
      %c0_38 = arith.constant 0 : index
      %c0_39 = arith.constant 0 : index
      %172 = vector.load %arg6[%c0_38, %c0_39] : memref<1x128xf32, #tpu.memory_space<vmem>>, vector<1x128xf32>
      %173 = vector.broadcast %172 : vector<1x128xf32> to vector<8x128xf32>
      %174 = arith.addf %171, %173 : vector<8x128xf32>
      %c0_40 = arith.constant 0 : index
      %c0_41 = arith.constant 0 : index
      %175 = vector.load %arg7[%c0_40, %c0_41] : memref<8x128xf32, #tpu.memory_space<vmem>>, vector<8x128xf32>
      tpu.vector_store %arg7[%c0_40, %c0_41], %174 {strides = array<i32>} : memref<8x128xf32, #tpu.memory_space<vmem>>, vector<8x128xf32>,
    } else {
    }
    return
  }
  func.func @transform_0(%arg0: i32) -> (i32, i32, i32) {
    %c0_i32 = arith.constant 0 : i32
    %c0_i32_0 = arith.constant 0 : i32
    %c0_i32_1 = arith.constant 0 : i32
    return %arg0, %c0_i32, %c0_i32_0 : i32, i32, i32
  }
  func.func @transform_1(%arg0: i32) -> (i32, i32) {
    %c0_i32 = arith.constant 0 : i32
    %c0_i32_0 = arith.constant 0 : i32
    %c0_i32_1 = arith.constant 0 : i32
    return %c0_i32, %c0_i32_0 : i32, i32
  }
  func.func @transform_2(%arg0: i32) -> (i32, i32) {
    %c0_i32 = arith.constant 0 : i32
    %c0_i32_0 = arith.constant 0 : i32
    %c0_i32_1 = arith.constant 0 : i32
    return %c0_i32, %c0_i32_0 : i32, i32
  }
  func.func @transform_3(%arg0: i32) -> (i32, i32) {
    %c0_i32 = arith.constant 0 : i32
    %c0_i32_0 = arith.constant 0 : i32
    %c0_i32_1 = arith.constant 0 : i32
    return %c0_i32, %c0_i32_0 : i32, i32
  }
  func.func @transform_4(%arg0: i32) -> (i32, i32) {
    %c0_i32 = arith.constant 0 : i32
    %c0_i32_0 = arith.constant 0 : i32
    %c0_i32_1 = arith.constant 0 : i32
    return %c0_i32, %c0_i32_0 : i32, i32
  }
  func.func @transform_5(%arg0: i32) -> (i32, i32) {
    %c0_i32 = arith.constant 0 : i32
    %c0_i32_0 = arith.constant 0 : i32
    %c0_i32_1 = arith.constant 0 : i32
    return %c0_i32, %c0_i32_0 : i32, i32
  }
  func.func @transform_6(%arg0: i32) -> (i32, i32) {
    %c0_i32 = arith.constant 0 : i32
    %c0_i32_0 = arith.constant 0 : i32
    %c0_i32_1 = arith.constant 0 : i32
    return %c0_i32, %c0_i32_0 : i32, i32
  }
}

</mosaic_0001>

<llo_original>
// kernel: tpu_custom_call.1
$region0: #{tpu_custom_call.1}
  #allocation0 [shape = 'u32[]', space=smem, size = 0x4, offset = 0x4, fixed_abs, tag = 'smem constant byte address 0x4 - core index']
  #allocation1 [shape = 'u32[144,128]{1,0:T(1,128)}', space=vmem, size = 0x12000, scoped, tag = 'internal scratch']
  #allocation2 [shape = 'f32[8,128]{1,0:T(8,128)}', space=vmem, size = 0x1000, scoped, tag = 'scratch operand']
  #allocation3 [shape = 'f32[8,128]{1,0:T(8,128)}', space=vmem, size = 0x1000, scoped, tag = 'scratch operand']
  %s0 = inlined_call_operand.hbm [shape: f32[8,8,16], index: 0, kind: input, shape index: {}]
  %s1 = inlined_call_operand.hbm [shape: f32[16,512], index: 1, kind: input, shape index: {}]
  %s2 = inlined_call_operand.hbm [shape: f32[128,512], index: 2, kind: input, shape index: {}]
  %s3 = inlined_call_operand.vmem [shape: f32[1,512], index: 3, kind: input, shape index: {}]
  %s4 = inlined_call_operand.hbm [shape: f32[128,128], index: 4, kind: input, shape index: {}]
  %s5 = inlined_call_operand.vmem [shape: f32[1,128], index: 5, kind: input, shape index: {}]
  %s6 = inlined_call_operand.hbm [shape: f32[8,128], index: 6, kind: output, shape index: {}]
  %s7 = sld [smem:[#allocation0]]
  $region58: #{tpu_custom_call.1} parent=0
    _
  %s9 = ssub.s32 1, %s7
  %s10 = scalar_select 0, %s9, %s7
  $region1: #{tpu_custom_call.1} parent=0
    #allocation4 [shape = 'u8[32768]{0}', space=vmem, size = 0x8000, scoped, tag = 'input window, operand 0, single buffered']
    #allocation5 [shape = 's32[1]{0}', space=sflag, size = 0x4, scoped, tag = 'scoped memory for tpu_custom_call.1']
    #allocation6 [shape = 's32[1]{0}', space=sflag, size = 0x4, scoped, tag = 'scoped memory for tpu_custom_call.1']
    #allocation7 [shape = 'u8[32768]{0}', space=vmem, size = 0x8000, scoped, tag = 'input window, operand 1, single buffered']
    #allocation8 [shape = 's32[1]{0}', space=sflag, size = 0x4, scoped, tag = 'scoped memory for tpu_custom_call.1']
    #allocation9 [shape = 'u8[262144]{0}', space=vmem, size = 0x40000, scoped, tag = 'input window, operand 2, single buffered']
    #allocation10 [shape = 'u8[65536]{0}', space=vmem, size = 0x10000, scoped, tag = 'input window, operand 4, single buffered']
    #allocation11 [shape = 's32[1]{0}', space=sflag, size = 0x4, scoped, tag = 'scoped memory for tpu_custom_call.1']
    #allocation12 [shape = 'u8[4096]{0}', space=vmem, size = 0x1000, scoped, tag = 'output window, operand 0, single buffered']
    %11 = vsyncpa [#allocation5], 0
    %12 = vsyncpa [#allocation8], 0
    %13 = vsyncpa [#allocation11], 0
    %14 = vsyncpa [#allocation6], 0
    // Predicated region
    $region2: #{tpu_custom_call.1} parent=1 // pred_check
      _
    $region3: #{tpu_custom_call.1} parent=1 // pred_check_branch
      %16 = sbr.rel (0) target = $region5
    $region4: #{tpu_custom_call.1} parent=1 // pred_region
      %s18 = ssub.s32 1024, 1024
      %19 = vsyncadd [#allocation5], %s18
      %s20 = sshll.u32 [#allocation4], 4
      %s21 = int_to_ptr.vmem [resolvable:$true] %s20
      %26 = dma.hbm_to_vmem [thread:$0]  %s0, 1024, %s21, [#allocation5], 128, 128, 8
    $region5: #{tpu_custom_call.1} parent=1 // pred_fallthru
      _
    // Predicated region
    $region6: #{tpu_custom_call.1} parent=1 // pred_check
      _
    $region7: #{tpu_custom_call.1} parent=1 // pred_check_branch
      %28 = sbr.rel (0) target = $region9
    $region8: #{tpu_custom_call.1} parent=1 // pred_region
      %s30 = ssub.s32 1024, 1024
      %31 = vsyncadd [#allocation8], %s30
      %s32 = sshll.u32 [#allocation7], 4
      %s33 = int_to_ptr.vmem [resolvable:$true] %s32
      %38 = dma.hbm_to_vmem [thread:$0]  %s1, 1024, %s33, [#allocation8], 512, 512, 32
    $region9: #{tpu_custom_call.1} parent=1 // pred_fallthru
      _
    // Predicated region
    $region10: #{tpu_custom_call.1} parent=1 // pred_check
      _
    $region11: #{tpu_custom_call.1} parent=1 // pred_check_branch
      %40 = sbr.rel (0) target = $region13
    $region12: #{tpu_custom_call.1} parent=1 // pred_region
      %s42 = ssub.s32 8192, 8192
      %43 = vsyncadd [#allocation8], %s42
      %s44 = sshll.u32 [#allocation9], 4
      %s45 = int_to_ptr.vmem [resolvable:$true] %s44
      %50 = dma.hbm_to_vmem [thread:$0]  %s2, 8192, %s45, [#allocation8], 512, 512, 32
    $region13: #{tpu_custom_call.1} parent=1 // pred_fallthru
      _
    // Predicated region
    $region14: #{tpu_custom_call.1} parent=1 // pred_check
      _
    $region15: #{tpu_custom_call.1} parent=1 // pred_check_branch
      %52 = sbr.rel (0) target = $region17
    $region16: #{tpu_custom_call.1} parent=1 // pred_region
      _
    $region17: #{tpu_custom_call.1} parent=1 // pred_fallthru
      _
    // Predicated region
    $region18: #{tpu_custom_call.1} parent=1 // pred_check
      _
    $region19: #{tpu_custom_call.1} parent=1 // pred_check_branch
      %54 = sbr.rel (0) target = $region21
    $region20: #{tpu_custom_call.1} parent=1 // pred_region
      %s56 = ssub.s32 2048, 2048
      %57 = vsyncadd [#allocation11], %s56
      %s58 = sshll.u32 [#allocation10], 4
      %s59 = int_to_ptr.vmem [resolvable:$true] %s58
      %64 = dma.hbm_to_vmem [thread:$0]  %s4, 2048, %s59, [#allocation11], 128, 128, 8
    $region21: #{tpu_custom_call.1} parent=1 // pred_fallthru
      _
    // Predicated region
    $region22: #{tpu_custom_call.1} parent=1 // pred_check
      _
    $region23: #{tpu_custom_call.1} parent=1 // pred_check_branch
      %66 = sbr.rel (0) target = $region25
    $region24: #{tpu_custom_call.1} parent=1 // pred_region
      _
    $region25: #{tpu_custom_call.1} parent=1 // pred_fallthru
      _
    // Predicated region
    $region26: #{tpu_custom_call.1} parent=1 // pred_check
      _
    $region27: #{tpu_custom_call.1} parent=1 // pred_check_branch
      %68 = sbr.rel (0) target = $region29
    $region28: #{tpu_custom_call.1} parent=1 // pred_region
      %69 = dma.done [#allocation5], 1024
    $region29: #{tpu_custom_call.1} parent=1 // pred_fallthru
      _
    // Predicated region
    $region30: #{tpu_custom_call.1} parent=1 // pred_check
      _
    $region31: #{tpu_custom_call.1} parent=1 // pred_check_branch
      %71 = sbr.rel (0) target = $region33
    $region32: #{tpu_custom_call.1} parent=1 // pred_region
      %72 = dma.done [#allocation8], 1024
    $region33: #{tpu_custom_call.1} parent=1 // pred_fallthru
      _
    // Predicated region
    $region34: #{tpu_custom_call.1} parent=1 // pred_check
      _
    $region35: #{tpu_custom_call.1} parent=1 // pred_check_branch
      %74 = sbr.rel (0) target = $region37
    $region36: #{tpu_custom_call.1} parent=1 // pred_region
      %75 = dma.done [#allocation8], 8192
    $region37: #{tpu_custom_call.1} parent=1 // pred_fallthru
      _
    // Predicated region
    $region38: #{tpu_custom_call.1} parent=1 // pred_check
      _
    $region39: #{tpu_custom_call.1} parent=1 // pred_check_branch
      %77 = sbr.rel (0) target = $region41
    $region40: #{tpu_custom_call.1} parent=1 // pred_region
      %78 = dma.done [#allocation11], 2048
    $region41: #{tpu_custom_call.1} parent=1 // pred_fallthru
      _
    %p79 = scmp.eq.s32.totalorder 0, 0
    // Predicated region
    $region42: #{tpu_custom_call.1} parent=1 // pred_check
      %p80 = pneg %p79
    $region43: #{tpu_custom_call.1} parent=1 // pred_check_branch
      %82 = sbr.rel (%p80) target = $region45
    $region44: #{tpu_custom_call.1} parent=1 // pred_region
      %83 = vst [vmem:[#allocation2] sm:$0xff] 0.0
      %84 = vst [vmem:[#allocation3] sm:$0xff] 0.0
    $region45: #{tpu_custom_call.1} parent=1 // pred_fallthru
      _
    %v85 = vld [vmem:[#allocation4] sm:$0xff]
    %v86 = vld [vmem:[#allocation4 + $0x8] sm:$0xff]
    %v87 = vld [vmem:[#allocation4 + $0x10] sm:$0xff]
    %v88 = vld [vmem:[#allocation4 + $0x18] sm:$0xff]
    %v89 = vld [vmem:[#allocation4 + $0x20] sm:$0xff]
    %v90 = vld [vmem:[#allocation4 + $0x28] sm:$0xff]
    %v91 = vld [vmem:[#allocation4 + $0x30] sm:$0xff]
    %v92 = vld [vmem:[#allocation4 + $0x38] sm:$0xff]
    %v93 = vld [vmem:[#allocation7] sm:$0xff]
    %v94 = vld [vmem:[#allocation7 + $0x8] sm:$0xff]
    %v95 = vld [vmem:[#allocation7 + $0x10] sm:$0xff]
    %v96 = vld [vmem:[#allocation7 + $0x18] sm:$0xff]
    %v97 = vld [vmem:[#allocation7 + $0x20] sm:$0xff]
    %v98 = vld [vmem:[#allocation7 + $0x28] sm:$0xff]
    %v99 = vld [vmem:[#allocation7 + $0x30] sm:$0xff]
    %v100 = vld [vmem:[#allocation7 + $0x38] sm:$0xff]
    %v101 = vld [vmem:[%s3] sm:$0xf]
    %v103 = vlaneseq
    %v104 = vshrl.u32 %v103, 7
    %v105 = vsub.s32 0, %v104
    %v106 = vrot.slane %v101, %v105
    %v107 = vlaneseq
    %v108 = vshrl.u32 %v107, 7
    %v109 = vsub.s32 1, %v108
    %v110 = vrot.slane %v101, %v109
    %v111 = vlaneseq
    %v112 = vshrl.u32 %v111, 7
    %v113 = vsub.s32 2, %v112
    %v114 = vrot.slane %v101, %v113
    %v115 = vlaneseq
    %v116 = vshrl.u32 %v115, 7
    %v117 = vsub.s32 3, %v116
    %v118 = vrot.slane %v101, %v117
    %vm123 = vcmask 130048
    %v125 = vsel %vm123, %v85, 0
    %v128 = vsel %vm123, %v86, 0
    %v131 = vsel %vm123, %v87, 0
    %v134 = vsel %vm123, %v88, 0
    %v137 = vsel %vm123, %v89, 0
    %v140 = vsel %vm123, %v90, 0
    %v143 = vsel %vm123, %v91, 0
    %v146 = vsel %vm123, %v92, 0
    %148 = vmatprep.subr.mxu0 0.0
    %149 = vmatpush1.msra.mxu0 0.0
    %150 = vmatprep.subr.mxu0 0.0
    %151 = vmatpush1.msra.mxu0 0.0
    %152 = vmatprep.subr.mxu0 0.0
    %153 = vmatpush1.msra.mxu0 0.0
    %154 = vmatprep.subr.mxu0 0.0
    %155 = vmatpush1.msra.mxu0 0.0
    %156 = vmatprep.subr.mxu0 0.0
    %157 = vmatpush1.msra.mxu0 0.0
    %158 = vmatprep.subr.mxu0 0.0
    %159 = vmatpush1.msra.mxu0 0.0
    %160 = vmatprep.subr.mxu0 0.0
    %161 = vmatpush1.msra.mxu0 0.0
    %162 = vmatprep.subr.mxu0 0.0
    %163 = vmatpush1.msra.mxu0 0.0
    %164 = vmatprep.subr.mxu0 0.0
    %165 = vmatpush1.msra.mxu0 0.0
    %166 = vmatprep.subr.mxu0 0.0
    %167 = vmatpush1.msra.mxu0 0.0
    %168 = vmatprep.subr.mxu0 0.0
    %169 = vmatpush1.msra.mxu0 0.0
    %170 = vmatprep.subr.mxu0 0.0
    %171 = vmatpush1.msra.mxu0 0.0
    %172 = vmatprep.subr.mxu0 0.0
    %173 = vmatpush1.msra.mxu0 0.0
    %174 = vmatprep.subr.mxu0 0.0
    %175 = vmatpush1.msra.mxu0 0.0
    %176 = vmatprep.subr.mxu0 %v98
    %177 = vmatpush1.msra.mxu0 %v97
    %178 = vmatprep.subr.mxu0 %v94
    %179 = vmatpush1.msra.mxu0 %v93
    %180 = vmatprep.subr.mxu0 0.0
    %181 = vmatpush2.msra.mxu0 0.0
    %182 = vmatprep.subr.mxu0 0.0
    %183 = vmatpush2.msra.mxu0 0.0
    %184 = vmatprep.subr.mxu0 0.0
    %185 = vmatpush2.msra.mxu0 0.0
    %186 = vmatprep.subr.mxu0 0.0
    %187 = vmatpush2.msra.mxu0 0.0
    %188 = vmatprep.subr.mxu0 0.0
    %189 = vmatpush2.msra.mxu0 0.0
    %190 = vmatprep.subr.mxu0 0.0
    %191 = vmatpush2.msra.mxu0 0.0
    %192 = vmatprep.subr.mxu0 0.0
    %193 = vmatpush2.msra.mxu0 0.0
    %194 = vmatprep.subr.mxu0 0.0
    %195 = vmatpush2.msra.mxu0 0.0
    %196 = vmatprep.subr.mxu0 0.0
    %197 = vmatpush2.msra.mxu0 0.0
    %198 = vmatprep.subr.mxu0 0.0
    %199 = vmatpush2.msra.mxu0 0.0
    %200 = vmatprep.subr.mxu0 0.0
    %201 = vmatpush2.msra.mxu0 0.0
    %202 = vmatprep.subr.mxu0 0.0
    %203 = vmatpush2.msra.mxu0 0.0
    %204 = vmatprep.subr.mxu0 0.0
    %205 = vmatpush2.msra.mxu0 0.0
    %206 = vmatprep.subr.mxu0 0.0
    %207 = vmatpush2.msra.mxu0 0.0
    %208 = vmatprep.subr.mxu0 0.0
    %209 = vmatpush2.msra.mxu0 0.0
    %210 = vmatprep.subr.mxu0 0.0
    %211 = vmatpush2.msra.mxu0 0.0
    %212 = vmatprep.mubr.f32.mxu0 0.0
    %213 = vmatmul.mubr.f32.gmra.mxu0 %v125
    %v214 = vpop.f32.mrf.mxu0
    %v215 = vadd.f32 %v106, %v214
    %v216 = vpop.f32.mrf.mxu0
    %v217 = vadd.f32 %v110, %v216
    %218 = vmatprep.mubr.f32.mxu0 0.0
    %219 = vmatmul.mubr.f32.gmra.mxu0 %v128
    %v220 = vpop.f32.mrf.mxu0
    %v221 = vadd.f32 %v106, %v220
    %v222 = vpop.f32.mrf.mxu0
    %v223 = vadd.f32 %v110, %v222
    %224 = vmatprep.mubr.f32.mxu0 0.0
    %225 = vmatmul.mubr.f32.gmra.mxu0 %v131
    %v226 = vpop.f32.mrf.mxu0
    %v227 = vadd.f32 %v106, %v226
    %v228 = vpop.f32.mrf.mxu0
    %v229 = vadd.f32 %v110, %v228
    %230 = vmatprep.mubr.f32.mxu0 0.0
    %231 = vmatmul.mubr.f32.gmra.mxu0 %v134
    %v232 = vpop.f32.mrf.mxu0
    %v233 = vadd.f32 %v106, %v232
    %v234 = vpop.f32.mrf.mxu0
    %v235 = vadd.f32 %v110, %v234
    %236 = vmatprep.mubr.f32.mxu0 0.0
    %237 = vmatmul.mubr.f32.gmra.mxu0 %v137
    %v238 = vpop.f32.mrf.mxu0
    %v239 = vadd.f32 %v106, %v238
    %v240 = vpop.f32.mrf.mxu0
    %v241 = vadd.f32 %v110, %v240
    %242 = vmatprep.mubr.f32.mxu0 0.0
    %243 = vmatmul.mubr.f32.gmra.mxu0 %v140
    %v244 = vpop.f32.mrf.mxu0
    %v245 = vadd.f32 %v106, %v244
    %v246 = vpop.f32.mrf.mxu0
    %v247 = vadd.f32 %v110, %v246
    %248 = vmatprep.mubr.f32.mxu0 0.0
    %249 = vmatmul.mubr.f32.gmra.mxu0 %v143
    %v250 = vpop.f32.mrf.mxu0
    %v251 = vadd.f32 %v106, %v250
    %v252 = vpop.f32.mrf.mxu0
    %v253 = vadd.f32 %v110, %v252
    %254 = vmatprep.mubr.f32.mxu0 0.0
    %255 = vmatmul.mubr.f32.gmra.mxu0 %v146
    %v256 = vpop.f32.mrf.mxu0
    %v257 = vadd.f32 %v106, %v256
    %v258 = vpop.f32.mrf.mxu0
    %v259 = vadd.f32 %v110, %v258
    %260 = vdwg.mxu0
    %261 = vmatprep.subr.mxu0 0.0
    %262 = vmatpush1.msra.mxu0 0.0
    %263 = vmatprep.subr.mxu0 0.0
    %264 = vmatpush1.msra.mxu0 0.0
    %265 = vmatprep.subr.mxu0 0.0
    %266 = vmatpush1.msra.mxu0 0.0
    %267 = vmatprep.subr.mxu0 0.0
    %268 = vmatpush1.msra.mxu0 0.0
    %269 = vmatprep.subr.mxu0 0.0
    %270 = vmatpush1.msra.mxu0 0.0
    %271 = vmatprep.subr.mxu0 0.0
    %272 = vmatpush1.msra.mxu0 0.0
    %273 = vmatprep.subr.mxu0 0.0
    %274 = vmatpush1.msra.mxu0 0.0
    %275 = vmatprep.subr.mxu0 0.0
    %276 = vmatpush1.msra.mxu0 0.0
    %277 = vmatprep.subr.mxu0 0.0
    %278 = vmatpush1.msra.mxu0 0.0
    %279 = vmatprep.subr.mxu0 0.0
    %280 = vmatpush1.msra.mxu0 0.0
    %281 = vmatprep.subr.mxu0 0.0
    %282 = vmatpush1.msra.mxu0 0.0
    %283 = vmatprep.subr.mxu0 0.0
    %284 = vmatpush1.msra.mxu0 0.0
    %285 = vmatprep.subr.mxu0 0.0
    %286 = vmatpush1.msra.mxu0 0.0
    %287 = vmatprep.subr.mxu0 0.0
    %288 = vmatpush1.msra.mxu0 0.0
    %289 = vmatprep.subr.mxu0 %v100
    %290 = vmatpush1.msra.mxu0 %v99
    %291 = vmatprep.subr.mxu0 %v96
    %292 = vmatpush1.msra.mxu0 %v95
    %293 = vmatprep.subr.mxu0 0.0
    %294 = vmatpush2.msra.mxu0 0.0
    %295 = vmatprep.subr.mxu0 0.0
    %296 = vmatpush2.msra.mxu0 0.0
    %297 = vmatprep.subr.mxu0 0.0
    %298 = vmatpush2.msra.mxu0 0.0
    %299 = vmatprep.subr.mxu0 0.0
    %300 = vmatpush2.msra.mxu0 0.0
    %301 = vmatprep.subr.mxu0 0.0
    %302 = vmatpush2.msra.mxu0 0.0
    %303 = vmatprep.subr.mxu0 0.0
    %304 = vmatpush2.msra.mxu0 0.0
    %305 = vmatprep.subr.mxu0 0.0
    %306 = vmatpush2.msra.mxu0 0.0
    %307 = vmatprep.subr.mxu0 0.0
    %308 = vmatpush2.msra.mxu0 0.0
    %309 = vmatprep.subr.mxu0 0.0
    %310 = vmatpush2.msra.mxu0 0.0
    %311 = vmatprep.subr.mxu0 0.0
    %312 = vmatpush2.msra.mxu0 0.0
    %313 = vmatprep.subr.mxu0 0.0
    %314 = vmatpush2.msra.mxu0 0.0
    %315 = vmatprep.subr.mxu0 0.0
    %316 = vmatpush2.msra.mxu0 0.0
    %317 = vmatprep.subr.mxu0 0.0
    %318 = vmatpush2.msra.mxu0 0.0
    %319 = vmatprep.subr.mxu0 0.0
    %320 = vmatpush2.msra.mxu0 0.0
    %321 = vmatprep.subr.mxu0 0.0
    %322 = vmatpush2.msra.mxu0 0.0
    %323 = vmatprep.subr.mxu0 0.0
    %324 = vmatpush2.msra.mxu0 0.0
    %325 = vmatprep.mubr.f32.mxu0 0.0
    %326 = vmatmul.mubr.f32.gmra.mxu0 %v125
    %v327 = vpop.f32.mrf.mxu0
    %v328 = vadd.f32 %v114, %v327
    %v329 = vpop.f32.mrf.mxu0
    %v330 = vadd.f32 %v118, %v329
    %331 = vmatprep.mubr.f32.mxu0 0.0
    %332 = vmatmul.mubr.f32.gmra.mxu0 %v128
    %v333 = vpop.f32.mrf.mxu0
    %v334 = vadd.f32 %v114, %v333
    %v335 = vpop.f32.mrf.mxu0
    %v336 = vadd.f32 %v118, %v335
    %337 = vmatprep.mubr.f32.mxu0 0.0
    %338 = vmatmul.mubr.f32.gmra.mxu0 %v131
    %v339 = vpop.f32.mrf.mxu0
    %v340 = vadd.f32 %v114, %v339
    %v341 = vpop.f32.mrf.mxu0
    %v342 = vadd.f32 %v118, %v341
    %343 = vmatprep.mubr.f32.mxu0 0.0
    %344 = vmatmul.mubr.f32.gmra.mxu0 %v134
    %v345 = vpop.f32.mrf.mxu0
    %v346 = vadd.f32 %v114, %v345
    %v347 = vpop.f32.mrf.mxu0
    %v348 = vadd.f32 %v118, %v347
    %349 = vmatprep.mubr.f32.mxu0 0.0
    %350 = vmatmul.mubr.f32.gmra.mxu0 %v137
    %v351 = vpop.f32.mrf.mxu0
    %v352 = vadd.f32 %v114, %v351
    %v353 = vpop.f32.mrf.mxu0
    %v354 = vadd.f32 %v118, %v353
    %355 = vmatprep.mubr.f32.mxu0 0.0
    %356 = vmatmul.mubr.f32.gmra.mxu0 %v140
    %v357 = vpop.f32.mrf.mxu0
    %v358 = vadd.f32 %v114, %v357
    %v359 = vpop.f32.mrf.mxu0
    %v360 = vadd.f32 %v118, %v359
    %361 = vmatprep.mubr.f32.mxu0 0.0
    %362 = vmatmul.mubr.f32.gmra.mxu0 %v143
    %v363 = vpop.f32.mrf.mxu0
    %v364 = vadd.f32 %v114, %v363
    %v365 = vpop.f32.mrf.mxu0
    %v366 = vadd.f32 %v118, %v365
    %367 = vmatprep.mubr.f32.mxu0 0.0
    %368 = vmatmul.mubr.f32.gmra.mxu0 %v146
    %v369 = vpop.f32.mrf.mxu0
    %v370 = vadd.f32 %v114, %v369
    %v371 = vpop.f32.mrf.mxu0
    %v372 = vadd.f32 %v118, %v371
    %373 = vdwg.mxu0
    %v374 = vld [vmem:[#allocation9] sm:$0xff]
    %v375 = vld [vmem:[#allocation9 + $0x8] sm:$0xff]
    %v376 = vld [vmem:[#allocation9 + $0x10] sm:$0xff]
    %v377 = vld [vmem:[#allocation9 + $0x18] sm:$0xff]
    %v378 = vld [vmem:[#allocation9 + $0x20] sm:$0xff]
    %v379 = vld [vmem:[#allocation9 + $0x28] sm:$0xff]
    %v380 = vld [vmem:[#allocation9 + $0x30] sm:$0xff]
    %v381 = vld [vmem:[#allocation9 + $0x38] sm:$0xff]
    %v382 = vld [vmem:[#allocation9 + $0x40] sm:$0xff]
    %v383 = vld [vmem:[#allocation9 + $0x48] sm:$0xff]
    %v384 = vld [vmem:[#allocation9 + $0x50] sm:$0xff]
    %v385 = vld [vmem:[#allocation9 + $0x58] sm:$0xff]
    %v386 = vld [vmem:[#allocation9 + $0x60] sm:$0xff]
    %v387 = vld [vmem:[#allocation9 + $0x68] sm:$0xff]
    %v388 = vld [vmem:[#allocation9 + $0x70] sm:$0xff]
    %v389 = vld [vmem:[#allocation9 + $0x78] sm:$0xff]
    %v390 = vld [vmem:[#allocation9 + $0x80] sm:$0xff]
    %v391 = vld [vmem:[#allocation9 + $0x88] sm:$0xff]
    %v392 = vld [vmem:[#allocation9 + $0x90] sm:$0xff]
    %v393 = vld [vmem:[#allocation9 + $0x98] sm:$0xff]
    %v394 = vld [vmem:[#allocation9 + $0xa0] sm:$0xff]
    %v395 = vld [vmem:[#allocation9 + $0xa8] sm:$0xff]
    %v396 = vld [vmem:[#allocation9 + $0xb0] sm:$0xff]
    %v397 = vld [vmem:[#allocation9 + $0xb8] sm:$0xff]
    %v398 = vld [vmem:[#allocation9 + $0xc0] sm:$0xff]
    %v399 = vld [vmem:[#allocation9 + $0xc8] sm:$0xff]
    %v400 = vld [vmem:[#allocation9 + $0xd0] sm:$0xff]
    %v401 = vld [vmem:[#allocation9 + $0xd8] sm:$0xff]
    %v402 = vld [vmem:[#allocation9 + $0xe0] sm:$0xff]
    %v403 = vld [vmem:[#allocation9 + $0xe8] sm:$0xff]
    %v404 = vld [vmem:[#allocation9 + $0xf0] sm:$0xff]
    %v405 = vld [vmem:[#allocation9 + $0xf8] sm:$0xff]
    %v406 = vld [vmem:[#allocation9 + $0x100] sm:$0xff]
    %v407 = vld [vmem:[#allocation9 + $0x108] sm:$0xff]
    %v408 = vld [vmem:[#allocation9 + $0x110] sm:$0xff]
    %v409 = vld [vmem:[#allocation9 + $0x118] sm:$0xff]
    %v410 = vld [vmem:[#allocation9 + $0x120] sm:$0xff]
    %v411 = vld [vmem:[#allocation9 + $0x128] sm:$0xff]
    %v412 = vld [vmem:[#allocation9 + $0x130] sm:$0xff]
    %v413 = vld [vmem:[#allocation9 + $0x138] sm:$0xff]
    %v414 = vld [vmem:[#allocation9 + $0x140] sm:$0xff]
    %v415 = vld [vmem:[#allocation9 + $0x148] sm:$0xff]
    %v416 = vld [vmem:[#allocation9 + $0x150] sm:$0xff]
    %v417 = vld [vmem:[#allocation9 + $0x158] sm:$0xff]
    %v418 = vld [vmem:[#allocation9 + $0x160] sm:$0xff]
    %v419 = vld [vmem:[#allocation9 + $0x168] sm:$0xff]
    %v420 = vld [vmem:[#allocation9 + $0x170] sm:$0xff]
    %v421 = vld [vmem:[#allocation9 + $0x178] sm:$0xff]
    %v422 = vld [vmem:[#allocation9 + $0x180] sm:$0xff]
    %v423 = vld [vmem:[#allocation9 + $0x188] sm:$0xff]
    %v424 = vld [vmem:[#allocation9 + $0x190] sm:$0xff]
    %v425 = vld [vmem:[#allocation9 + $0x198] sm:$0xff]
    %v426 = vld [vmem:[#allocation9 + $0x1a0] sm:$0xff]
    %v427 = vld [vmem:[#allocation9 + $0x1a8] sm:$0xff]
    %v428 = vld [vmem:[#allocation9 + $0x1b0] sm:$0xff]
    %v429 = vld [vmem:[#allocation9 + $0x1b8] sm:$0xff]
    %v430 = vld [vmem:[#allocation9 + $0x1c0] sm:$0xff]
    %v431 = vld [vmem:[#allocation9 + $0x1c8] sm:$0xff]
    %v432 = vld [vmem:[#allocation9 + $0x1d0] sm:$0xff]
    %v433 = vld [vmem:[#allocation9 + $0x1d8] sm:$0xff]
    %v434 = vld [vmem:[#allocation9 + $0x1e0] sm:$0xff]
    %v435 = vld [vmem:[#allocation9 + $0x1e8] sm:$0xff]
    %v436 = vld [vmem:[#allocation9 + $0x1f0] sm:$0xff]
    %v437 = vld [vmem:[#allocation9 + $0x1f8] sm:$0xff]
    %v438 = vld [vmem:[#allocation2] sm:$0xff]
    %v439 = vld [vmem:[#allocation3] sm:$0xff]
    %440 = vmatprep.subr.mxu0 %v435
    %441 = vmatpush1.msra.mxu0 %v434
    %442 = vmatprep.subr.mxu0 %v431
    %443 = vmatpush1.msra.mxu0 %v430
    %444 = vmatprep.subr.mxu0 %v427
    %445 = vmatpush1.msra.mxu0 %v426
    %446 = vmatprep.subr.mxu0 %v423
    %447 = vmatpush1.msra.mxu0 %v422
    %448 = vmatprep.subr.mxu0 %v419
    %449 = vmatpush1.msra.mxu0 %v418
    %450 = vmatprep.subr.mxu0 %v415
    %451 = vmatpush1.msra.mxu0 %v414
    %452 = vmatprep.subr.mxu0 %v411
    %453 = vmatpush1.msra.mxu0 %v410
    %454 = vmatprep.subr.mxu0 %v407
    %455 = vmatpush1.msra.mxu0 %v406
    %456 = vmatprep.subr.mxu0 %v403
    %457 = vmatpush1.msra.mxu0 %v402
    %458 = vmatprep.subr.mxu0 %v399
    %459 = vmatpush1.msra.mxu0 %v398
    %460 = vmatprep.subr.mxu0 %v395
    %461 = vmatpush1.msra.mxu0 %v394
    %462 = vmatprep.subr.mxu0 %v391
    %463 = vmatpush1.msra.mxu0 %v390
    %464 = vmatprep.subr.mxu0 %v387
    %465 = vmatpush1.msra.mxu0 %v386
    %466 = vmatprep.subr.mxu0 %v383
    %467 = vmatpush1.msra.mxu0 %v382
    %468 = vmatprep.subr.mxu0 %v379
    %469 = vmatpush1.msra.mxu0 %v378
    %470 = vmatprep.subr.mxu0 %v375
    %471 = vmatpush1.msra.mxu0 %v374
    %472 = vmatprep.subr.mxu0 0.0
    %473 = vmatpush2.msra.mxu0 0.0
    %474 = vmatprep.subr.mxu0 0.0
    %475 = vmatpush2.msra.mxu0 0.0
    %476 = vmatprep.subr.mxu0 0.0
    %477 = vmatpush2.msra.mxu0 0.0
    %478 = vmatprep.subr.mxu0 0.0
    %479 = vmatpush2.msra.mxu0 0.0
    %480 = vmatprep.subr.mxu0 0.0
    %481 = vmatpush2.msra.mxu0 0.0
    %482 = vmatprep.subr.mxu0 0.0
    %483 = vmatpush2.msra.mxu0 0.0
    %484 = vmatprep.subr.mxu0 0.0
    %485 = vmatpush2.msra.mxu0 0.0
    %486 = vmatprep.subr.mxu0 0.0
    %487 = vmatpush2.msra.mxu0 0.0
    %488 = vmatprep.subr.mxu0 0.0
    %489 = vmatpush2.msra.mxu0 0.0
    %490 = vmatprep.subr.mxu0 0.0
    %491 = vmatpush2.msra.mxu0 0.0
    %492 = vmatprep.subr.mxu0 0.0
    %493 = vmatpush2.msra.mxu0 0.0
    %494 = vmatprep.subr.mxu0 0.0
    %495 = vmatpush2.msra.mxu0 0.0
    %496 = vmatprep.subr.mxu0 0.0
    %497 = vmatpush2.msra.mxu0 0.0
    %498 = vmatprep.subr.mxu0 0.0
    %499 = vmatpush2.msra.mxu0 0.0
    %500 = vmatprep.subr.mxu0 0.0
    %501 = vmatpush2.msra.mxu0 0.0
    %502 = vmatprep.subr.mxu0 0.0
    %503 = vmatpush2.msra.mxu0 0.0
    %504 = vmatprep.mubr.f32.mxu0 0.0
    %505 = vmatmul.mubr.f32.gmra.mxu0 %v438
    %v506 = vpop.f32.mrf.mxu0
    %v507 = vadd.f32 0.0, %v506
    %v508 = vpop.f32.mrf.mxu0
    %v509 = vadd.f32 0.0, %v508
    %510 = vdwg.mxu0
    %511 = vmatprep.subr.mxu0 %v437
    %512 = vmatpush1.msra.mxu0 %v436
    %513 = vmatprep.subr.mxu0 %v433
    %514 = vmatpush1.msra.mxu0 %v432
    %515 = vmatprep.subr.mxu0 %v429
    %516 = vmatpush1.msra.mxu0 %v428
    %517 = vmatprep.subr.mxu0 %v425
    %518 = vmatpush1.msra.mxu0 %v424
    %519 = vmatprep.subr.mxu0 %v421
    %520 = vmatpush1.msra.mxu0 %v420
    %521 = vmatprep.subr.mxu0 %v417
    %522 = vmatpush1.msra.mxu0 %v416
    %523 = vmatprep.subr.mxu0 %v413
    %524 = vmatpush1.msra.mxu0 %v412
    %525 = vmatprep.subr.mxu0 %v409
    %526 = vmatpush1.msra.mxu0 %v408
    %527 = vmatprep.subr.mxu0 %v405
    %528 = vmatpush1.msra.mxu0 %v404
    %529 = vmatprep.subr.mxu0 %v401
    %530 = vmatpush1.msra.mxu0 %v400
    %531 = vmatprep.subr.mxu0 %v397
    %532 = vmatpush1.msra.mxu0 %v396
    %533 = vmatprep.subr.mxu0 %v393
    %534 = vmatpush1.msra.mxu0 %v392
    %535 = vmatprep.subr.mxu0 %v389
    %536 = vmatpush1.msra.mxu0 %v388
    %537 = vmatprep.subr.mxu0 %v385
    %538 = vmatpush1.msra.mxu0 %v384
    %539 = vmatprep.subr.mxu0 %v381
    %540 = vmatpush1.msra.mxu0 %v380
    %541 = vmatprep.subr.mxu0 %v377
    %542 = vmatpush1.msra.mxu0 %v376
    %543 = vmatprep.subr.mxu0 0.0
    %544 = vmatpush2.msra.mxu0 0.0
    %545 = vmatprep.subr.mxu0 0.0
    %546 = vmatpush2.msra.mxu0 0.0
    %547 = vmatprep.subr.mxu0 0.0
    %548 = vmatpush2.msra.mxu0 0.0
    %549 = vmatprep.subr.mxu0 0.0
    %550 = vmatpush2.msra.mxu0 0.0
    %551 = vmatprep.subr.mxu0 0.0
    %552 = vmatpush2.msra.mxu0 0.0
    %553 = vmatprep.subr.mxu0 0.0
    %554 = vmatpush2.msra.mxu0 0.0
    %555 = vmatprep.subr.mxu0 0.0
    %556 = vmatpush2.msra.mxu0 0.0
    %557 = vmatprep.subr.mxu0 0.0
    %558 = vmatpush2.msra.mxu0 0.0
    %559 = vmatprep.subr.mxu0 0.0
    %560 = vmatpush2.msra.mxu0 0.0
    %561 = vmatprep.subr.mxu0 0.0
    %562 = vmatpush2.msra.mxu0 0.0
    %563 = vmatprep.subr.mxu0 0.0
    %564 = vmatpush2.msra.mxu0 0.0
    %565 = vmatprep.subr.mxu0 0.0
    %566 = vmatpush2.msra.mxu0 0.0
    %567 = vmatprep.subr.mxu0 0.0
    %568 = vmatpush2.msra.mxu0 0.0
    %569 = vmatprep.subr.mxu0 0.0
    %570 = vmatpush2.msra.mxu0 0.0
    %571 = vmatprep.subr.mxu0 0.0
    %572 = vmatpush2.msra.mxu0 0.0
    %573 = vmatprep.subr.mxu0 0.0
    %574 = vmatpush2.msra.mxu0 0.0
    %575 = vmatprep.mubr.f32.mxu0 0.0
    %576 = vmatmul.mubr.f32.gmra.mxu0 %v438
    %v577 = vpop.f32.mrf.mxu0
    %v578 = vadd.f32 0.0, %v577
    %v579 = vpop.f32.mrf.mxu0
    %v580 = vadd.f32 0.0, %v579
    %581 = vdwg.mxu0
    %v582 = vadd.f32 %v215, %v507
    %v583 = vadd.f32 %v217, %v509
    %v584 = vadd.f32 %v328, %v578
    %v585 = vadd.f32 %v330, %v580
    %v586 = vxor.u32 %v582, 2147483648
    %v587 = vxor.u32 %v583, 2147483648
    %v588 = vxor.u32 %v584, 2147483648
    %v589 = vmul.f32 %v586, 1.442695
    %v590 = vpow.pop %v589
    %v591 = vmul.f32 %v587, 1.442695
    %v592 = vpow.pop %v591
    %v593 = vmul.f32 %v588, 1.442695
    %v594 = vpow.pop %v593
    %v595 = vadd.f32 %v590, 1.0
    %v596 = vadd.f32 %v592, 1.0
    %v597 = vadd.f32 %v594, 1.0
    %v598 = vrcp.pop %v595
    %v599 = vmul.f32 1.0, %v598
    %v600 = vrcp.pop %v596
    %v601 = vmul.f32 1.0, %v600
    %v602 = vrcp.pop %v597
    %v603 = vmul.f32 1.0, %v602
    %v604 = vtanh.pop %v585
    %v605 = vmul.f32 %v601, %v439
    %v606 = vmul.f32 %v599, %v604
    %v607 = vadd.f32 %v605, %v606
    %v608 = vtanh.pop %v607
    %v609 = vmul.f32 %v603, %v608
    %610 = vmatprep.subr.mxu0 %v435
    %611 = vmatpush1.msra.mxu0 %v434
    %612 = vmatprep.subr.mxu0 %v431
    %613 = vmatpush1.msra.mxu0 %v430
    %614 = vmatprep.subr.mxu0 %v427
    %615 = vmatpush1.msra.mxu0 %v426
    %616 = vmatprep.subr.mxu0 %v423
    %617 = vmatpush1.msra.mxu0 %v422
    %618 = vmatprep.subr.mxu0 %v419
    %619 = vmatpush1.msra.mxu0 %v418
    %620 = vmatprep.subr.mxu0 %v415
    %621 = vmatpush1.msra.mxu0 %v414
    %622 = vmatprep.subr.mxu0 %v411
    %623 = vmatpush1.msra.mxu0 %v410
    %624 = vmatprep.subr.mxu0 %v407
    %625 = vmatpush1.msra.mxu0 %v406
    %626 = vmatprep.subr.mxu0 %v403
    %627 = vmatpush1.msra.mxu0 %v402
    %628 = vmatprep.subr.mxu0 %v399
    %629 = vmatpush1.msra.mxu0 %v398
    %630 = vmatprep.subr.mxu0 %v395
    %631 = vmatpush1.msra.mxu0 %v394
    %632 = vmatprep.subr.mxu0 %v391
    %633 = vmatpush1.msra.mxu0 %v390
    %634 = vmatprep.subr.mxu0 %v387
    %635 = vmatpush1.msra.mxu0 %v386
    %636 = vmatprep.subr.mxu0 %v383
    %637 = vmatpush1.msra.mxu0 %v382
    %638 = vmatprep.subr.mxu0 %v379
    %639 = vmatpush1.msra.mxu0 %v378
    %640 = vmatprep.subr.mxu0 %v375
    %641 = vmatpush1.msra.mxu0 %v374
    %642 = vmatprep.subr.mxu0 0.0
    %643 = vmatpush2.msra.mxu0 0.0
    %644 = vmatprep.subr.mxu0 0.0
    %645 = vmatpush2.msra.mxu0 0.0
    %646 = vmatprep.subr.mxu0 0.0
    %647 = vmatpush2.msra.mxu0 0.0
    %648 = vmatprep.subr.mxu0 0.0
    %649 = vmatpush2.msra.mxu0 0.0
    %650 = vmatprep.subr.mxu0 0.0
    %651 = vmatpush2.msra.mxu0 0.0
    %652 = vmatprep.subr.mxu0 0.0
    %653 = vmatpush2.msra.mxu0 0.0
    %654 = vmatprep.subr.mxu0 0.0
    %655 = vmatpush2.msra.mxu0 0.0
    %656 = vmatprep.subr.mxu0 0.0
    %657 = vmatpush2.msra.mxu0 0.0
    %658 = vmatprep.subr.mxu0 0.0
    %659 = vmatpush2.msra.mxu0 0.0
    %660 = vmatprep.subr.mxu0 0.0
    %661 = vmatpush2.msra.mxu0 0.0
    %662 = vmatprep.subr.mxu0 0.0
    %663 = vmatpush2.msra.mxu0 0.0
    %664 = vmatprep.subr.mxu0 0.0
    %665 = vmatpush2.msra.mxu0 0.0
    %666 = vmatprep.subr.mxu0 0.0
    %667 = vmatpush2.msra.mxu0 0.0
    %668 = vmatprep.subr.mxu0 0.0
    %669 = vmatpush2.msra.mxu0 0.0
    %670 = vmatprep.subr.mxu0 0.0
    %671 = vmatpush2.msra.mxu0 0.0
    %672 = vmatprep.subr.mxu0 0.0
    %673 = vmatpush2.msra.mxu0 0.0
    %674 = vmatprep.mubr.f32.mxu0 0.0
    %675 = vmatmul.mubr.f32.gmra.mxu0 %v609
    %v676 = vpop.f32.mrf.mxu0
    %v677 = vadd.f32 0.0, %v676
    %v678 = vpop.f32.mrf.mxu0
    %v679 = vadd.f32 0.0, %v678
    %680 = vdwg.mxu0
    %681 = vmatprep.subr.mxu0 %v437
    %682 = vmatpush1.msra.mxu0 %v436
    %683 = vmatprep.subr.mxu0 %v433
    %684 = vmatpush1.msra.mxu0 %v432
    %685 = vmatprep.subr.mxu0 %v429
    %686 = vmatpush1.msra.mxu0 %v428
    %687 = vmatprep.subr.mxu0 %v425
    %688 = vmatpush1.msra.mxu0 %v424
    %689 = vmatprep.subr.mxu0 %v421
    %690 = vmatpush1.msra.mxu0 %v420
    %691 = vmatprep.subr.mxu0 %v417
    %692 = vmatpush1.msra.mxu0 %v416
    %693 = vmatprep.subr.mxu0 %v413
    %694 = vmatpush1.msra.mxu0 %v412
    %695 = vmatprep.subr.mxu0 %v409
    %696 = vmatpush1.msra.mxu0 %v408
    %697 = vmatprep.subr.mxu0 %v405
    %698 = vmatpush1.msra.mxu0 %v404
    %699 = vmatprep.subr.mxu0 %v401
    %700 = vmatpush1.msra.mxu0 %v400
    %701 = vmatprep.subr.mxu0 %v397
    %702 = vmatpush1.msra.mxu0 %v396
    %703 = vmatprep.subr.mxu0 %v393
    %704 = vmatpush1.msra.mxu0 %v392
    %705 = vmatprep.subr.mxu0 %v389
    %706 = vmatpush1.msra.mxu0 %v388
    %707 = vmatprep.subr.mxu0 %v385
    %708 = vmatpush1.msra.mxu0 %v384
    %709 = vmatprep.subr.mxu0 %v381
    %710 = vmatpush1.msra.mxu0 %v380
    %711 = vmatprep.subr.mxu0 %v377
    %712 = vmatpush1.msra.mxu0 %v376
    %713 = vmatprep.subr.mxu0 0.0
    %714 = vmatpush2.msra.mxu0 0.0
    %715 = vmatprep.subr.mxu0 0.0
    %716 = vmatpush2.msra.mxu0 0.0
    %717 = vmatprep.subr.mxu0 0.0
    %718 = vmatpush2.msra.mxu0 0.0
    %719 = vmatprep.subr.mxu0 0.0
    %720 = vmatpush2.msra.mxu0 0.0
    %721 = vmatprep.subr.mxu0 0.0
    %722 = vmatpush2.msra.mxu0 0.0
    %723 = vmatprep.subr.mxu0 0.0
    %724 = vmatpush2.msra.mxu0 0.0
    %725 = vmatprep.subr.mxu0 0.0
    %726 = vmatpush2.msra.mxu0 0.0
    %727 = vmatprep.subr.mxu0 0.0
    %728 = vmatpush2.msra.mxu0 0.0
    %729 = vmatprep.subr.mxu0 0.0
    %730 = vmatpush2.msra.mxu0 0.0
    %731 = vmatprep.subr.mxu0 0.0
    %732 = vmatpush2.msra.mxu0 0.0
    %733 = vmatprep.subr.mxu0 0.0
    %734 = vmatpush2.msra.mxu0 0.0
    %735 = vmatprep.subr.mxu0 0.0
    %736 = vmatpush2.msra.mxu0 0.0
    %737 = vmatprep.subr.mxu0 0.0
    %738 = vmatpush2.msra.mxu0 0.0
    %739 = vmatprep.subr.mxu0 0.0
    %740 = vmatpush2.msra.mxu0 0.0
    %741 = vmatprep.subr.mxu0 0.0
    %742 = vmatpush2.msra.mxu0 0.0
    %743 = vmatprep.subr.mxu0 0.0
    %744 = vmatpush2.msra.mxu0 0.0
    %745 = vmatprep.mubr.f32.mxu0 0.0
    %746 = vmatmul.mubr.f32.gmra.mxu0 %v609
    %v747 = vpop.f32.mrf.mxu0
    %v748 = vadd.f32 0.0, %v747
    %v749 = vpop.f32.mrf.mxu0
    %v750 = vadd.f32 0.0, %v749
    %751 = vdwg.mxu0
    %v752 = vadd.f32 %v221, %v677
    %v753 = vadd.f32 %v223, %v679
    %v754 = vadd.f32 %v334, %v748
    %v755 = vadd.f32 %v336, %v750
    %v756 = vxor.u32 %v752, 2147483648
    %v757 = vxor.u32 %v753, 2147483648
    %v758 = vxor.u32 %v754, 2147483648
    %v759 = vmul.f32 %v756, 1.442695
    %v760 = vpow.pop %v759
    %v761 = vmul.f32 %v757, 1.442695
    %v762 = vpow.pop %v761
    %v763 = vmul.f32 %v758, 1.442695
    %v764 = vpow.pop %v763
    %v765 = vadd.f32 %v760, 1.0
    %v766 = vadd.f32 %v762, 1.0
    %v767 = vadd.f32 %v764, 1.0
    %v768 = vrcp.pop %v765
    %v769 = vmul.f32 1.0, %v768
    %v770 = vrcp.pop %v766
    %v771 = vmul.f32 1.0, %v770
    %v772 = vrcp.pop %v767
    %v773 = vmul.f32 1.0, %v772
    %v774 = vtanh.pop %v755
    %v775 = vmul.f32 %v771, %v607
    %v776 = vmul.f32 %v769, %v774
    %v777 = vadd.f32 %v775, %v776
    %v778 = vtanh.pop %v777
    %v779 = vmul.f32 %v773, %v778
    %780 = vmatprep.subr.mxu0 %v435
    %781 = vmatpush1.msra.mxu0 %v434
    %782 = vmatprep.subr.mxu0 %v431
    %783 = vmatpush1.msra.mxu0 %v430
    %784 = vmatprep.subr.mxu0 %v427
    %785 = vmatpush1.msra.mxu0 %v426
    %786 = vmatprep.subr.mxu0 %v423
    %787 = vmatpush1.msra.mxu0 %v422
    %788 = vmatprep.subr.mxu0 %v419
    %789 = vmatpush1.msra.mxu0 %v418
    %790 = vmatprep.subr.mxu0 %v415
    %791 = vmatpush1.msra.mxu0 %v414
    %792 = vmatprep.subr.mxu0 %v411
    %793 = vmatpush1.msra.mxu0 %v410
    %794 = vmatprep.subr.mxu0 %v407
    %795 = vmatpush1.msra.mxu0 %v406
    %796 = vmatprep.subr.mxu0 %v403
    %797 = vmatpush1.msra.mxu0 %v402
    %798 = vmatprep.subr.mxu0 %v399
    %799 = vmatpush1.msra.mxu0 %v398
    %800 = vmatprep.subr.mxu0 %v395
    %801 = vmatpush1.msra.mxu0 %v394
    %802 = vmatprep.subr.mxu0 %v391
    %803 = vmatpush1.msra.mxu0 %v390
    %804 = vmatprep.subr.mxu0 %v387
    %805 = vmatpush1.msra.mxu0 %v386
    %806 = vmatprep.subr.mxu0 %v383
    %807 = vmatpush1.msra.mxu0 %v382
    %808 = vmatprep.subr.mxu0 %v379
    %809 = vmatpush1.msra.mxu0 %v378
    %810 = vmatprep.subr.mxu0 %v375
    %811 = vmatpush1.msra.mxu0 %v374
    %812 = vmatprep.subr.mxu0 0.0
    %813 = vmatpush2.msra.mxu0 0.0
    %814 = vmatprep.subr.mxu0 0.0
    %815 = vmatpush2.msra.mxu0 0.0
    %816 = vmatprep.subr.mxu0 0.0
    %817 = vmatpush2.msra.mxu0 0.0
    %818 = vmatprep.subr.mxu0 0.0
    %819 = vmatpush2.msra.mxu0 0.0
    %820 = vmatprep.subr.mxu0 0.0
    %821 = vmatpush2.msra.mxu0 0.0
    %822 = vmatprep.subr.mxu0 0.0
    %823 = vmatpush2.msra.mxu0 0.0
    %824 = vmatprep.subr.mxu0 0.0
    %825 = vmatpush2.msra.mxu0 0.0
    %826 = vmatprep.subr.mxu0 0.0
    %827 = vmatpush2.msra.mxu0 0.0
    %828 = vmatprep.subr.mxu0 0.0
    %829 = vmatpush2.msra.mxu0 0.0
    %830 = vmatprep.subr.mxu0 0.0
    %831 = vmatpush2.msra.mxu0 0.0
    %832 = vmatprep.subr.mxu0 0.0
    %833 = vmatpush2.msra.mxu0 0.0
    %834 = vmatprep.subr.mxu0 0.0
    %835 = vmatpush2.msra.mxu0 0.0
    %836 = vmatprep.subr.mxu0 0.0
    %837 = vmatpush2.msra.mxu0 0.0
    %838 = vmatprep.subr.mxu0 0.0
    %839 = vmatpush2.msra.mxu0 0.0
    %840 = vmatprep.subr.mxu0 0.0
    %841 = vmatpush2.msra.mxu0 0.0
    %842 = vmatprep.subr.mxu0 0.0
    %843 = vmatpush2.msra.mxu0 0.0
    %844 = vmatprep.mubr.f32.mxu0 0.0
    %845 = vmatmul.mubr.f32.gmra.mxu0 %v779
    %v846 = vpop.f32.mrf.mxu0
    %v847 = vadd.f32 0.0, %v846
    %v848 = vpop.f32.mrf.mxu0
    %v849 = vadd.f32 0.0, %v848
    %850 = vdwg.mxu0
    %851 = vmatprep.subr.mxu0 %v437
    %852 = vmatpush1.msra.mxu0 %v436
    %853 = vmatprep.subr.mxu0 %v433
    %854 = vmatpush1.msra.mxu0 %v432
    %855 = vmatprep.subr.mxu0 %v429
    %856 = vmatpush1.msra.mxu0 %v428
    %857 = vmatprep.subr.mxu0 %v425
    %858 = vmatpush1.msra.mxu0 %v424
    %859 = vmatprep.subr.mxu0 %v421
    %860 = vmatpush1.msra.mxu0 %v420
    %861 = vmatprep.subr.mxu0 %v417
    %862 = vmatpush1.msra.mxu0 %v416
    %863 = vmatprep.subr.mxu0 %v413
    %864 = vmatpush1.msra.mxu0 %v412
    %865 = vmatprep.subr.mxu0 %v409
    %866 = vmatpush1.msra.mxu0 %v408
    %867 = vmatprep.subr.mxu0 %v405
    %868 = vmatpush1.msra.mxu0 %v404
    %869 = vmatprep.subr.mxu0 %v401
    %870 = vmatpush1.msra.mxu0 %v400
    %871 = vmatprep.subr.mxu0 %v397
    %872 = vmatpush1.msra.mxu0 %v396
    %873 = vmatprep.subr.mxu0 %v393
    %874 = vmatpush1.msra.mxu0 %v392
    %875 = vmatprep.subr.mxu0 %v389
    %876 = vmatpush1.msra.mxu0 %v388
    %877 = vmatprep.subr.mxu0 %v385
    %878 = vmatpush1.msra.mxu0 %v384
    %879 = vmatprep.subr.mxu0 %v381
    %880 = vmatpush1.msra.mxu0 %v380
    %881 = vmatprep.subr.mxu0 %v377
    %882 = vmatpush1.msra.mxu0 %v376
    %883 = vmatprep.subr.mxu0 0.0
    %884 = vmatpush2.msra.mxu0 0.0
    %885 = vmatprep.subr.mxu0 0.0
    %886 = vmatpush2.msra.mxu0 0.0
    %887 = vmatprep.subr.mxu0 0.0
    %888 = vmatpush2.msra.mxu0 0.0
    %889 = vmatprep.subr.mxu0 0.0
    %890 = vmatpush2.msra.mxu0 0.0
    %891 = vmatprep.subr.mxu0 0.0
    %892 = vmatpush2.msra.mxu0 0.0
    %893 = vmatprep.subr.mxu0 0.0
    %894 = vmatpush2.msra.mxu0 0.0
    %895 = vmatprep.subr.mxu0 0.0
    %896 = vmatpush2.msra.mxu0 0.0
    %897 = vmatprep.subr.mxu0 0.0
    %898 = vmatpush2.msra.mxu0 0.0
    %899 = vmatprep.subr.mxu0 0.0
    %900 = vmatpush2.msra.mxu0 0.0
    %901 = vmatprep.subr.mxu0 0.0
    %902 = vmatpush2.msra.mxu0 0.0
    %903 = vmatprep.subr.mxu0 0.0
    %904 = vmatpush2.msra.mxu0 0.0
    %905 = vmatprep.subr.mxu0 0.0
    %906 = vmatpush2.msra.mxu0 0.0
    %907 = vmatprep.subr.mxu0 0.0
    %908 = vmatpush2.msra.mxu0 0.0
    %909 = vmatprep.subr.mxu0 0.0
    %910 = vmatpush2.msra.mxu0 0.0
    %911 = vmatprep.subr.mxu0 0.0
    %912 = vmatpush2.msra.mxu0 0.0
    %913 = vmatprep.subr.mxu0 0.0
    %914 = vmatpush2.msra.mxu0 0.0
    %915 = vmatprep.mubr.f32.mxu0 0.0
    %916 = vmatmul.mubr.f32.gmra.mxu0 %v779
    %v917 = vpop.f32.mrf.mxu0
    %v918 = vadd.f32 0.0, %v917
    %v919 = vpop.f32.mrf.mxu0
    %v920 = vadd.f32 0.0, %v919
    %921 = vdwg.mxu0
    %v922 = vadd.f32 %v227, %v847
    %v923 = vadd.f32 %v229, %v849
    %v924 = vadd.f32 %v340, %v918
    %v925 = vadd.f32 %v342, %v920
    %v926 = vxor.u32 %v922, 2147483648
    %v927 = vxor.u32 %v923, 2147483648
    %v928 = vxor.u32 %v924, 2147483648
    %v929 = vmul.f32 %v926, 1.442695
    %v930 = vpow.pop %v929
    %v931 = vmul.f32 %v927, 1.442695
    %v932 = vpow.pop %v931
    %v933 = vmul.f32 %v928, 1.442695
    %v934 = vpow.pop %v933
    %v935 = vadd.f32 %v930, 1.0
    %v936 = vadd.f32 %v932, 1.0
    %v937 = vadd.f32 %v934, 1.0
    %v938 = vrcp.pop %v935
    %v939 = vmul.f32 1.0, %v938
    %v940 = vrcp.pop %v936
    %v941 = vmul.f32 1.0, %v940
    %v942 = vrcp.pop %v937
    %v943 = vmul.f32 1.0, %v942
    %v944 = vtanh.pop %v925
    %v945 = vmul.f32 %v941, %v777
    %v946 = vmul.f32 %v939, %v944
    %v947 = vadd.f32 %v945, %v946
    %v948 = vtanh.pop %v947
    %v949 = vmul.f32 %v943, %v948
    %950 = vmatprep.subr.mxu0 %v435
    %951 = vmatpush1.msra.mxu0 %v434
    %952 = vmatprep.subr.mxu0 %v431
    %953 = vmatpush1.msra.mxu0 %v430
    %954 = vmatprep.subr.mxu0 %v427
    %955 = vmatpush1.msra.mxu0 %v426
    %956 = vmatprep.subr.mxu0 %v423
    %957 = vmatpush1.msra.mxu0 %v422
    %958 = vmatprep.subr.mxu0 %v419
    %959 = vmatpush1.msra.mxu0 %v418
    %960 = vmatprep.subr.mxu0 %v415
    %961 = vmatpush1.msra.mxu0 %v414
    %962 = vmatprep.subr.mxu0 %v411
    %963 = vmatpush1.msra.mxu0 %v410
    %964 = vmatprep.subr.mxu0 %v407
    %965 = vmatpush1.msra.mxu0 %v406
    %966 = vmatprep.subr.mxu0 %v403
    %967 = vmatpush1.msra.mxu0 %v402
    %968 = vmatprep.subr.mxu0 %v399
    %969 = vmatpush1.msra.mxu0 %v398
    %970 = vmatprep.subr.mxu0 %v395
    %971 = vmatpush1.msra.mxu0 %v394
    %972 = vmatprep.subr.mxu0 %v391
    %973 = vmatpush1.msra.mxu0 %v390
    %974 = vmatprep.subr.mxu0 %v387
    %975 = vmatpush1.msra.mxu0 %v386
    %976 = vmatprep.subr.mxu0 %v383
    %977 = vmatpush1.msra.mxu0 %v382
    %978 = vmatprep.subr.mxu0 %v379
    %979 = vmatpush1.msra.mxu0 %v378
    %980 = vmatprep.subr.mxu0 %v375
    %981 = vmatpush1.msra.mxu0 %v374
    %982 = vmatprep.subr.mxu0 0.0
    %983 = vmatpush2.msra.mxu0 0.0
    %984 = vmatprep.subr.mxu0 0.0
    %985 = vmatpush2.msra.mxu0 0.0
    %986 = vmatprep.subr.mxu0 0.0
    %987 = vmatpush2.msra.mxu0 0.0
    %988 = vmatprep.subr.mxu0 0.0
    %989 = vmatpush2.msra.mxu0 0.0
    %990 = vmatprep.subr.mxu0 0.0
    %991 = vmatpush2.msra.mxu0 0.0
    %992 = vmatprep.subr.mxu0 0.0
    %993 = vmatpush2.msra.mxu0 0.0
    %994 = vmatprep.subr.mxu0 0.0
    %995 = vmatpush2.msra.mxu0 0.0
    %996 = vmatprep.subr.mxu0 0.0
    %997 = vmatpush2.msra.mxu0 0.0
    %998 = vmatprep.subr.mxu0 0.0
    %999 = vmatpush2.msra.mxu0 0.0
    %1000 = vmatprep.subr.mxu0 0.0
    %1001 = vmatpush2.msra.mxu0 0.0
    %1002 = vmatprep.subr.mxu0 0.0
    %1003 = vmatpush2.msra.mxu0 0.0
    %1004 = vmatprep.subr.mxu0 0.0
    %1005 = vmatpush2.msra.mxu0 0.0
    %1006 = vmatprep.subr.mxu0 0.0
    %1007 = vmatpush2.msra.mxu0 0.0
    %1008 = vmatprep.subr.mxu0 0.0
    %1009 = vmatpush2.msra.mxu0 0.0
    %1010 = vmatprep.subr.mxu0 0.0
    %1011 = vmatpush2.msra.mxu0 0.0
    %1012 = vmatprep.subr.mxu0 0.0
    %1013 = vmatpush2.msra.mxu0 0.0
    %1014 = vmatprep.mubr.f32.mxu0 0.0
    %1015 = vmatmul.mubr.f32.gmra.mxu0 %v949
    %v1016 = vpop.f32.mrf.mxu0
    %v1017 = vadd.f32 0.0, %v1016
    %v1018 = vpop.f32.mrf.mxu0
    %v1019 = vadd.f32 0.0, %v1018
    %1020 = vdwg.mxu0
    %1021 = vmatprep.subr.mxu0 %v437
    %1022 = vmatpush1.msra.mxu0 %v436
    %1023 = vmatprep.subr.mxu0 %v433
    %1024 = vmatpush1.msra.mxu0 %v432
    %1025 = vmatprep.subr.mxu0 %v429
    %1026 = vmatpush1.msra.mxu0 %v428
    %1027 = vmatprep.subr.mxu0 %v425
    %1028 = vmatpush1.msra.mxu0 %v424
    %1029 = vmatprep.subr.mxu0 %v421
    %1030 = vmatpush1.msra.mxu0 %v420
    %1031 = vmatprep.subr.mxu0 %v417
    %1032 = vmatpush1.msra.mxu0 %v416
    %1033 = vmatprep.subr.mxu0 %v413
    %1034 = vmatpush1.msra.mxu0 %v412
    %1035 = vmatprep.subr.mxu0 %v409
    %1036 = vmatpush1.msra.mxu0 %v408
    %1037 = vmatprep.subr.mxu0 %v405
    %1038 = vmatpush1.msra.mxu0 %v404
    %1039 = vmatprep.subr.mxu0 %v401
    %1040 = vmatpush1.msra.mxu0 %v400
    %1041 = vmatprep.subr.mxu0 %v397
    %1042 = vmatpush1.msra.mxu0 %v396
    %1043 = vmatprep.subr.mxu0 %v393
    %1044 = vmatpush1.msra.mxu0 %v392
    %1045 = vmatprep.subr.mxu0 %v389
    %1046 = vmatpush1.msra.mxu0 %v388
    %1047 = vmatprep.subr.mxu0 %v385
    %1048 = vmatpush1.msra.mxu0 %v384
    %1049 = vmatprep.subr.mxu0 %v381
    %1050 = vmatpush1.msra.mxu0 %v380
    %1051 = vmatprep.subr.mxu0 %v377
    %1052 = vmatpush1.msra.mxu0 %v376
    %1053 = vmatprep.subr.mxu0 0.0
    %1054 = vmatpush2.msra.mxu0 0.0
    %1055 = vmatprep.subr.mxu0 0.0
    %1056 = vmatpush2.msra.mxu0 0.0
    %1057 = vmatprep.subr.mxu0 0.0
    %1058 = vmatpush2.msra.mxu0 0.0
    %1059 = vmatprep.subr.mxu0 0.0
    %1060 = vmatpush2.msra.mxu0 0.0
    %1061 = vmatprep.subr.mxu0 0.0
    %1062 = vmatpush2.msra.mxu0 0.0
    %1063 = vmatprep.subr.mxu0 0.0
    %1064 = vmatpush2.msra.mxu0 0.0
    %1065 = vmatprep.subr.mxu0 0.0
    %1066 = vmatpush2.msra.mxu0 0.0
    %1067 = vmatprep.subr.mxu0 0.0
    %1068 = vmatpush2.msra.mxu0 0.0
    %1069 = vmatprep.subr.mxu0 0.0
    %1070 = vmatpush2.msra.mxu0 0.0
    %1071 = vmatprep.subr.mxu0 0.0
    %1072 = vmatpush2.msra.mxu0 0.0
    %1073 = vmatprep.subr.mxu0 0.0
    %1074 = vmatpush2.msra.mxu0 0.0
    %1075 = vmatprep.subr.mxu0 0.0
    %1076 = vmatpush2.msra.mxu0 0.0
    %1077 = vmatprep.subr.mxu0 0.0
    %1078 = vmatpush2.msra.mxu0 0.0
    %1079 = vmatprep.subr.mxu0 0.0
    %1080 = vmatpush2.msra.mxu0 0.0
    %1081 = vmatprep.subr.mxu0 0.0
    %1082 = vmatpush2.msra.mxu0 0.0
    %1083 = vmatprep.subr.mxu0 0.0
    %1084 = vmatpush2.msra.mxu0 0.0
    %1085 = vmatprep.mubr.f32.mxu0 0.0
    %1086 = vmatmul.mubr.f32.gmra.mxu0 %v949
    %v1087 = vpop.f32.mrf.mxu0
    %v1088 = vadd.f32 0.0, %v1087
    %v1089 = vpop.f32.mrf.mxu0
    %v1090 = vadd.f32 0.0, %v1089
    %1091 = vdwg.mxu0
    %v1092 = vadd.f32 %v233, %v1017
    %v1093 = vadd.f32 %v235, %v1019
    %v1094 = vadd.f32 %v346, %v1088
    %v1095 = vadd.f32 %v348, %v1090
    %v1096 = vxor.u32 %v1092, 2147483648
    %v1097 = vxor.u32 %v1093, 2147483648
    %v1098 = vxor.u32 %v1094, 2147483648
    %v1099 = vmul.f32 %v1096, 1.442695
    %v1100 = vpow.pop %v1099
    %v1101 = vmul.f32 %v1097, 1.442695
    %v1102 = vpow.pop %v1101
    %v1103 = vmul.f32 %v1098, 1.442695
    %v1104 = vpow.pop %v1103
    %v1105 = vadd.f32 %v1100, 1.0
    %v1106 = vadd.f32 %v1102, 1.0
    %v1107 = vadd.f32 %v1104, 1.0
    %v1108 = vrcp.pop %v1105
    %v1109 = vmul.f32 1.0, %v1108
    %v1110 = vrcp.pop %v1106
    %v1111 = vmul.f32 1.0, %v1110
    %v1112 = vrcp.pop %v1107
    %v1113 = vmul.f32 1.0, %v1112
    %v1114 = vtanh.pop %v1095
    %v1115 = vmul.f32 %v1111, %v947
    %v1116 = vmul.f32 %v1109, %v1114
    %v1117 = vadd.f32 %v1115, %v1116
    %v1118 = vtanh.pop %v1117
    %v1119 = vmul.f32 %v1113, %v1118
    %1120 = vmatprep.subr.mxu0 %v435
    %1121 = vmatpush1.msra.mxu0 %v434
    %1122 = vmatprep.subr.mxu0 %v431
    %1123 = vmatpush1.msra.mxu0 %v430
    %1124 = vmatprep.subr.mxu0 %v427
    %1125 = vmatpush1.msra.mxu0 %v426
    %1126 = vmatprep.subr.mxu0 %v423
    %1127 = vmatpush1.msra.mxu0 %v422
    %1128 = vmatprep.subr.mxu0 %v419
    %1129 = vmatpush1.msra.mxu0 %v418
    %1130 = vmatprep.subr.mxu0 %v415
    %1131 = vmatpush1.msra.mxu0 %v414
    %1132 = vmatprep.subr.mxu0 %v411
    %1133 = vmatpush1.msra.mxu0 %v410
    %1134 = vmatprep.subr.mxu0 %v407
    %1135 = vmatpush1.msra.mxu0 %v406
    %1136 = vmatprep.subr.mxu0 %v403
    %1137 = vmatpush1.msra.mxu0 %v402
    %1138 = vmatprep.subr.mxu0 %v399
    %1139 = vmatpush1.msra.mxu0 %v398
    %1140 = vmatprep.subr.mxu0 %v395
    %1141 = vmatpush1.msra.mxu0 %v394
    %1142 = vmatprep.subr.mxu0 %v391
    %1143 = vmatpush1.msra.mxu0 %v390
    %1144 = vmatprep.subr.mxu0 %v387
    %1145 = vmatpush1.msra.mxu0 %v386
    %1146 = vmatprep.subr.mxu0 %v383
    %1147 = vmatpush1.msra.mxu0 %v382
    %1148 = vmatprep.subr.mxu0 %v379
    %1149 = vmatpush1.msra.mxu0 %v378
    %1150 = vmatprep.subr.mxu0 %v375
    %1151 = vmatpush1.msra.mxu0 %v374
    %1152 = vmatprep.subr.mxu0 0.0
    %1153 = vmatpush2.msra.mxu0 0.0
    %1154 = vmatprep.subr.mxu0 0.0
    %1155 = vmatpush2.msra.mxu0 0.0
    %1156 = vmatprep.subr.mxu0 0.0
    %1157 = vmatpush2.msra.mxu0 0.0
    %1158 = vmatprep.subr.mxu0 0.0
    %1159 = vmatpush2.msra.mxu0 0.0
    %1160 = vmatprep.subr.mxu0 0.0
    %1161 = vmatpush2.msra.mxu0 0.0
    %1162 = vmatprep.subr.mxu0 0.0
    %1163 = vmatpush2.msra.mxu0 0.0
    %1164 = vmatprep.subr.mxu0 0.0
    %1165 = vmatpush2.msra.mxu0 0.0
    %1166 = vmatprep.subr.mxu0 0.0
    %1167 = vmatpush2.msra.mxu0 0.0
    %1168 = vmatprep.subr.mxu0 0.0
    %1169 = vmatpush2.msra.mxu0 0.0
    %1170 = vmatprep.subr.mxu0 0.0
    %1171 = vmatpush2.msra.mxu0 0.0
    %1172 = vmatprep.subr.mxu0 0.0
    %1173 = vmatpush2.msra.mxu0 0.0
    %1174 = vmatprep.subr.mxu0 0.0
    %1175 = vmatpush2.msra.mxu0 0.0
    %1176 = vmatprep.subr.mxu0 0.0
    %1177 = vmatpush2.msra.mxu0 0.0
    %1178 = vmatprep.subr.mxu0 0.0
    %1179 = vmatpush2.msra.mxu0 0.0
    %1180 = vmatprep.subr.mxu0 0.0
    %1181 = vmatpush2.msra.mxu0 0.0
    %1182 = vmatprep.subr.mxu0 0.0
    %1183 = vmatpush2.msra.mxu0 0.0
    %1184 = vmatprep.mubr.f32.mxu0 0.0
    %1185 = vmatmul.mubr.f32.gmra.mxu0 %v1119
    %v1186 = vpop.f32.mrf.mxu0
    %v1187 = vadd.f32 0.0, %v1186
    %v1188 = vpop.f32.mrf.mxu0
    %v1189 = vadd.f32 0.0, %v1188
    %1190 = vdwg.mxu0
    %1191 = vmatprep.subr.mxu0 %v437
    %1192 = vmatpush1.msra.mxu0 %v436
    %1193 = vmatprep.subr.mxu0 %v433
    %1194 = vmatpush1.msra.mxu0 %v432
    %1195 = vmatprep.subr.mxu0 %v429
    %1196 = vmatpush1.msra.mxu0 %v428
    %1197 = vmatprep.subr.mxu0 %v425
    %1198 = vmatpush1.msra.mxu0 %v424
    %1199 = vmatprep.subr.mxu0 %v421
    %1200 = vmatpush1.msra.mxu0 %v420
    %1201 = vmatprep.subr.mxu0 %v417
    %1202 = vmatpush1.msra.mxu0 %v416
    %1203 = vmatprep.subr.mxu0 %v413
    %1204 = vmatpush1.msra.mxu0 %v412
    %1205 = vmatprep.subr.mxu0 %v409
    %1206 = vmatpush1.msra.mxu0 %v408
    %1207 = vmatprep.subr.mxu0 %v405
    %1208 = vmatpush1.msra.mxu0 %v404
    %1209 = vmatprep.subr.mxu0 %v401
    %1210 = vmatpush1.msra.mxu0 %v400
    %1211 = vmatprep.subr.mxu0 %v397
    %1212 = vmatpush1.msra.mxu0 %v396
    %1213 = vmatprep.subr.mxu0 %v393
    %1214 = vmatpush1.msra.mxu0 %v392
    %1215 = vmatprep.subr.mxu0 %v389
    %1216 = vmatpush1.msra.mxu0 %v388
    %1217 = vmatprep.subr.mxu0 %v385
    %1218 = vmatpush1.msra.mxu0 %v384
    %1219 = vmatprep.subr.mxu0 %v381
    %1220 = vmatpush1.msra.mxu0 %v380
    %1221 = vmatprep.subr.mxu0 %v377
    %1222 = vmatpush1.msra.mxu0 %v376
    %1223 = vmatprep.subr.mxu0 0.0
    %1224 = vmatpush2.msra.mxu0 0.0
    %1225 = vmatprep.subr.mxu0 0.0
    %1226 = vmatpush2.msra.mxu0 0.0
    %1227 = vmatprep.subr.mxu0 0.0
    %1228 = vmatpush2.msra.mxu0 0.0
    %1229 = vmatprep.subr.mxu0 0.0
    %1230 = vmatpush2.msra.mxu0 0.0
    %1231 = vmatprep.subr.mxu0 0.0
    %1232 = vmatpush2.msra.mxu0 0.0
    %1233 = vmatprep.subr.mxu0 0.0
    %1234 = vmatpush2.msra.mxu0 0.0
    %1235 = vmatprep.subr.mxu0 0.0
    %1236 = vmatpush2.msra.mxu0 0.0
    %1237 = vmatprep.subr.mxu0 0.0
    %1238 = vmatpush2.msra.mxu0 0.0
    %1239 = vmatprep.subr.mxu0 0.0
    %1240 = vmatpush2.msra.mxu0 0.0
    %1241 = vmatprep.subr.mxu0 0.0
    %1242 = vmatpush2.msra.mxu0 0.0
    %1243 = vmatprep.subr.mxu0 0.0
    %1244 = vmatpush2.msra.mxu0 0.0
    %1245 = vmatprep.subr.mxu0 0.0
    %1246 = vmatpush2.msra.mxu0 0.0
    %1247 = vmatprep.subr.mxu0 0.0
    %1248 = vmatpush2.msra.mxu0 0.0
    %1249 = vmatprep.subr.mxu0 0.0
    %1250 = vmatpush2.msra.mxu0 0.0
    %1251 = vmatprep.subr.mxu0 0.0
    %1252 = vmatpush2.msra.mxu0 0.0
    %1253 = vmatprep.subr.mxu0 0.0
    %1254 = vmatpush2.msra.mxu0 0.0
    %1255 = vmatprep.mubr.f32.mxu0 0.0
    %1256 = vmatmul.mubr.f32.gmra.mxu0 %v1119
    %v1257 = vpop.f32.mrf.mxu0
    %v1258 = vadd.f32 0.0, %v1257
    %v1259 = vpop.f32.mrf.mxu0
    %v1260 = vadd.f32 0.0, %v1259
    %1261 = vdwg.mxu0
    %v1262 = vadd.f32 %v239, %v1187
    %v1263 = vadd.f32 %v241, %v1189
    %v1264 = vadd.f32 %v352, %v1258
    %v1265 = vadd.f32 %v354, %v1260
    %v1266 = vxor.u32 %v1262, 2147483648
    %v1267 = vxor.u32 %v1263, 2147483648
    %v1268 = vxor.u32 %v1264, 2147483648
    %v1269 = vmul.f32 %v1266, 1.442695
    %v1270 = vpow.pop %v1269
    %v1271 = vmul.f32 %v1267, 1.442695
    %v1272 = vpow.pop %v1271
    %v1273 = vmul.f32 %v1268, 1.442695
    %v1274 = vpow.pop %v1273
    %v1275 = vadd.f32 %v1270, 1.0
    %v1276 = vadd.f32 %v1272, 1.0
    %v1277 = vadd.f32 %v1274, 1.0
    %v1278 = vrcp.pop %v1275
    %v1279 = vmul.f32 1.0, %v1278
    %v1280 = vrcp.pop %v1276
    %v1281 = vmul.f32 1.0, %v1280
    %v1282 = vrcp.pop %v1277
    %v1283 = vmul.f32 1.0, %v1282
    %v1284 = vtanh.pop %v1265
    %v1285 = vmul.f32 %v1281, %v1117
    %v1286 = vmul.f32 %v1279, %v1284
    %v1287 = vadd.f32 %v1285, %v1286
    %v1288 = vtanh.pop %v1287
    %v1289 = vmul.f32 %v1283, %v1288
    %1290 = vmatprep.subr.mxu0 %v435
    %1291 = vmatpush1.msra.mxu0 %v434
    %1292 = vmatprep.subr.mxu0 %v431
    %1293 = vmatpush1.msra.mxu0 %v430
    %1294 = vmatprep.subr.mxu0 %v427
    %1295 = vmatpush1.msra.mxu0 %v426
    %1296 = vmatprep.subr.mxu0 %v423
    %1297 = vmatpush1.msra.mxu0 %v422
    %1298 = vmatprep.subr.mxu0 %v419
    %1299 = vmatpush1.msra.mxu0 %v418
    %1300 = vmatprep.subr.mxu0 %v415
    %1301 = vmatpush1.msra.mxu0 %v414
    %1302 = vmatprep.subr.mxu0 %v411
    %1303 = vmatpush1.msra.mxu0 %v410
    %1304 = vmatprep.subr.mxu0 %v407
    %1305 = vmatpush1.msra.mxu0 %v406
    %1306 = vmatprep.subr.mxu0 %v403
    %1307 = vmatpush1.msra.mxu0 %v402
    %1308 = vmatprep.subr.mxu0 %v399
    %1309 = vmatpush1.msra.mxu0 %v398
    %1310 = vmatprep.subr.mxu0 %v395
    %1311 = vmatpush1.msra.mxu0 %v394
    %1312 = vmatprep.subr.mxu0 %v391
    %1313 = vmatpush1.msra.mxu0 %v390
    %1314 = vmatprep.subr.mxu0 %v387
    %1315 = vmatpush1.msra.mxu0 %v386
    %1316 = vmatprep.subr.mxu0 %v383
    %1317 = vmatpush1.msra.mxu0 %v382
    %1318 = vmatprep.subr.mxu0 %v379
    %1319 = vmatpush1.msra.mxu0 %v378
    %1320 = vmatprep.subr.mxu0 %v375
    %1321 = vmatpush1.msra.mxu0 %v374
    %1322 = vmatprep.subr.mxu0 0.0
    %1323 = vmatpush2.msra.mxu0 0.0
    %1324 = vmatprep.subr.mxu0 0.0
    %1325 = vmatpush2.msra.mxu0 0.0
    %1326 = vmatprep.subr.mxu0 0.0
    %1327 = vmatpush2.msra.mxu0 0.0
    %1328 = vmatprep.subr.mxu0 0.0
    %1329 = vmatpush2.msra.mxu0 0.0
    %1330 = vmatprep.subr.mxu0 0.0
    %1331 = vmatpush2.msra.mxu0 0.0
    %1332 = vmatprep.subr.mxu0 0.0
    %1333 = vmatpush2.msra.mxu0 0.0
    %1334 = vmatprep.subr.mxu0 0.0
    %1335 = vmatpush2.msra.mxu0 0.0
    %1336 = vmatprep.subr.mxu0 0.0
    %1337 = vmatpush2.msra.mxu0 0.0
    %1338 = vmatprep.subr.mxu0 0.0
    %1339 = vmatpush2.msra.mxu0 0.0
    %1340 = vmatprep.subr.mxu0 0.0
    %1341 = vmatpush2.msra.mxu0 0.0
    %1342 = vmatprep.subr.mxu0 0.0
    %1343 = vmatpush2.msra.mxu0 0.0
    %1344 = vmatprep.subr.mxu0 0.0
    %1345 = vmatpush2.msra.mxu0 0.0
    %1346 = vmatprep.subr.mxu0 0.0
    %1347 = vmatpush2.msra.mxu0 0.0
    %1348 = vmatprep.subr.mxu0 0.0
    %1349 = vmatpush2.msra.mxu0 0.0
    %1350 = vmatprep.subr.mxu0 0.0
    %1351 = vmatpush2.msra.mxu0 0.0
    %1352 = vmatprep.subr.mxu0 0.0
    %1353 = vmatpush2.msra.mxu0 0.0
    %1354 = vmatprep.mubr.f32.mxu0 0.0
    %1355 = vmatmul.mubr.f32.gmra.mxu0 %v1289
    %v1356 = vpop.f32.mrf.mxu0
    %v1357 = vadd.f32 0.0, %v1356
    %v1358 = vpop.f32.mrf.mxu0
    %v1359 = vadd.f32 0.0, %v1358
    %1360 = vdwg.mxu0
    %1361 = vmatprep.subr.mxu0 %v437
    %1362 = vmatpush1.msra.mxu0 %v436
    %1363 = vmatprep.subr.mxu0 %v433
    %1364 = vmatpush1.msra.mxu0 %v432
    %1365 = vmatprep.subr.mxu0 %v429
    %1366 = vmatpush1.msra.mxu0 %v428
    %1367 = vmatprep.subr.mxu0 %v425
    %1368 = vmatpush1.msra.mxu0 %v424
    %1369 = vmatprep.subr.mxu0 %v421
    %1370 = vmatpush1.msra.mxu0 %v420
    %1371 = vmatprep.subr.mxu0 %v417
    %1372 = vmatpush1.msra.mxu0 %v416
    %1373 = vmatprep.subr.mxu0 %v413
    %1374 = vmatpush1.msra.mxu0 %v412
    %1375 = vmatprep.subr.mxu0 %v409
    %1376 = vmatpush1.msra.mxu0 %v408
    %1377 = vmatprep.subr.mxu0 %v405
    %1378 = vmatpush1.msra.mxu0 %v404
    %1379 = vmatprep.subr.mxu0 %v401
    %1380 = vmatpush1.msra.mxu0 %v400
    %1381 = vmatprep.subr.mxu0 %v397
    %1382 = vmatpush1.msra.mxu0 %v396
    %1383 = vmatprep.subr.mxu0 %v393
    %1384 = vmatpush1.msra.mxu0 %v392
    %1385 = vmatprep.subr.mxu0 %v389
    %1386 = vmatpush1.msra.mxu0 %v388
    %1387 = vmatprep.subr.mxu0 %v385
    %1388 = vmatpush1.msra.mxu0 %v384
    %1389 = vmatprep.subr.mxu0 %v381
    %1390 = vmatpush1.msra.mxu0 %v380
    %1391 = vmatprep.subr.mxu0 %v377
    %1392 = vmatpush1.msra.mxu0 %v376
    %1393 = vmatprep.subr.mxu0 0.0
    %1394 = vmatpush2.msra.mxu0 0.0
    %1395 = vmatprep.subr.mxu0 0.0
    %1396 = vmatpush2.msra.mxu0 0.0
    %1397 = vmatprep.subr.mxu0 0.0
    %1398 = vmatpush2.msra.mxu0 0.0
    %1399 = vmatprep.subr.mxu0 0.0
    %1400 = vmatpush2.msra.mxu0 0.0
    %1401 = vmatprep.subr.mxu0 0.0
    %1402 = vmatpush2.msra.mxu0 0.0
    %1403 = vmatprep.subr.mxu0 0.0
    %1404 = vmatpush2.msra.mxu0 0.0
    %1405 = vmatprep.subr.mxu0 0.0
    %1406 = vmatpush2.msra.mxu0 0.0
    %1407 = vmatprep.subr.mxu0 0.0
    %1408 = vmatpush2.msra.mxu0 0.0
    %1409 = vmatprep.subr.mxu0 0.0
    %1410 = vmatpush2.msra.mxu0 0.0
    %1411 = vmatprep.subr.mxu0 0.0
    %1412 = vmatpush2.msra.mxu0 0.0
    %1413 = vmatprep.subr.mxu0 0.0
    %1414 = vmatpush2.msra.mxu0 0.0
    %1415 = vmatprep.subr.mxu0 0.0
    %1416 = vmatpush2.msra.mxu0 0.0
    %1417 = vmatprep.subr.mxu0 0.0
    %1418 = vmatpush2.msra.mxu0 0.0
    %1419 = vmatprep.subr.mxu0 0.0
    %1420 = vmatpush2.msra.mxu0 0.0
    %1421 = vmatprep.subr.mxu0 0.0
    %1422 = vmatpush2.msra.mxu0 0.0
    %1423 = vmatprep.subr.mxu0 0.0
    %1424 = vmatpush2.msra.mxu0 0.0
    %1425 = vmatprep.mubr.f32.mxu0 0.0
    %1426 = vmatmul.mubr.f32.gmra.mxu0 %v1289
    %v1427 = vpop.f32.mrf.mxu0
    %v1428 = vadd.f32 0.0, %v1427
    %v1429 = vpop.f32.mrf.mxu0
    %v1430 = vadd.f32 0.0, %v1429
    %1431 = vdwg.mxu0
    %v1432 = vadd.f32 %v245, %v1357
    %v1433 = vadd.f32 %v247, %v1359
    %v1434 = vadd.f32 %v358, %v1428
    %v1435 = vadd.f32 %v360, %v1430
    %v1436 = vxor.u32 %v1432, 2147483648
    %v1437 = vxor.u32 %v1433, 2147483648
    %v1438 = vxor.u32 %v1434, 2147483648
    %v1439 = vmul.f32 %v1436, 1.442695
    %v1440 = vpow.pop %v1439
    %v1441 = vmul.f32 %v1437, 1.442695
    %v1442 = vpow.pop %v1441
    %v1443 = vmul.f32 %v1438, 1.442695
    %v1444 = vpow.pop %v1443
    %v1445 = vadd.f32 %v1440, 1.0
    %v1446 = vadd.f32 %v1442, 1.0
    %v1447 = vadd.f32 %v1444, 1.0
    %v1448 = vrcp.pop %v1445
    %v1449 = vmul.f32 1.0, %v1448
    %v1450 = vrcp.pop %v1446
    %v1451 = vmul.f32 1.0, %v1450
    %v1452 = vrcp.pop %v1447
    %v1453 = vmul.f32 1.0, %v1452
    %v1454 = vtanh.pop %v1435
    %v1455 = vmul.f32 %v1451, %v1287
    %v1456 = vmul.f32 %v1449, %v1454
    %v1457 = vadd.f32 %v1455, %v1456
    %v1458 = vtanh.pop %v1457
    %v1459 = vmul.f32 %v1453, %v1458
    %1460 = vmatprep.subr.mxu0 %v435
    %1461 = vmatpush1.msra.mxu0 %v434
    %1462 = vmatprep.subr.mxu0 %v431
    %1463 = vmatpush1.msra.mxu0 %v430
    %1464 = vmatprep.subr.mxu0 %v427
    %1465 = vmatpush1.msra.mxu0 %v426
    %1466 = vmatprep.subr.mxu0 %v423
    %1467 = vmatpush1.msra.mxu0 %v422
    %1468 = vmatprep.subr.mxu0 %v419
    %1469 = vmatpush1.msra.mxu0 %v418
    %1470 = vmatprep.subr.mxu0 %v415
    %1471 = vmatpush1.msra.mxu0 %v414
    %1472 = vmatprep.subr.mxu0 %v411
    %1473 = vmatpush1.msra.mxu0 %v410
    %1474 = vmatprep.subr.mxu0 %v407
    %1475 = vmatpush1.msra.mxu0 %v406
    %1476 = vmatprep.subr.mxu0 %v403
    %1477 = vmatpush1.msra.mxu0 %v402
    %1478 = vmatprep.subr.mxu0 %v399
    %1479 = vmatpush1.msra.mxu0 %v398
    %1480 = vmatprep.subr.mxu0 %v395
    %1481 = vmatpush1.msra.mxu0 %v394
    %1482 = vmatprep.subr.mxu0 %v391
    %1483 = vmatpush1.msra.mxu0 %v390
    %1484 = vmatprep.subr.mxu0 %v387
    %1485 = vmatpush1.msra.mxu0 %v386
    %1486 = vmatprep.subr.mxu0 %v383
    %1487 = vmatpush1.msra.mxu0 %v382
    %1488 = vmatprep.subr.mxu0 %v379
    %1489 = vmatpush1.msra.mxu0 %v378
    %1490 = vmatprep.subr.mxu0 %v375
    %1491 = vmatpush1.msra.mxu0 %v374
    %1492 = vmatprep.subr.mxu0 0.0
    %1493 = vmatpush2.msra.mxu0 0.0
    %1494 = vmatprep.subr.mxu0 0.0
    %1495 = vmatpush2.msra.mxu0 0.0
    %1496 = vmatprep.subr.mxu0 0.0
    %1497 = vmatpush2.msra.mxu0 0.0
    %1498 = vmatprep.subr.mxu0 0.0
    %1499 = vmatpush2.msra.mxu0 0.0
    %1500 = vmatprep.subr.mxu0 0.0
    %1501 = vmatpush2.msra.mxu0 0.0
    %1502 = vmatprep.subr.mxu0 0.0
    %1503 = vmatpush2.msra.mxu0 0.0
    %1504 = vmatprep.subr.mxu0 0.0
    %1505 = vmatpush2.msra.mxu0 0.0
    %1506 = vmatprep.subr.mxu0 0.0
    %1507 = vmatpush2.msra.mxu0 0.0
    %1508 = vmatprep.subr.mxu0 0.0
    %1509 = vmatpush2.msra.mxu0 0.0
    %1510 = vmatprep.subr.mxu0 0.0
    %1511 = vmatpush2.msra.mxu0 0.0
    %1512 = vmatprep.subr.mxu0 0.0
    %1513 = vmatpush2.msra.mxu0 0.0
    %1514 = vmatprep.subr.mxu0 0.0
    %1515 = vmatpush2.msra.mxu0 0.0
    %1516 = vmatprep.subr.mxu0 0.0
    %1517 = vmatpush2.msra.mxu0 0.0
    %1518 = vmatprep.subr.mxu0 0.0
    %1519 = vmatpush2.msra.mxu0 0.0
    %1520 = vmatprep.subr.mxu0 0.0
    %1521 = vmatpush2.msra.mxu0 0.0
    %1522 = vmatprep.subr.mxu0 0.0
    %1523 = vmatpush2.msra.mxu0 0.0
    %1524 = vmatprep.mubr.f32.mxu0 0.0
    %1525 = vmatmul.mubr.f32.gmra.mxu0 %v1459
    %v1526 = vpop.f32.mrf.mxu0
    %v1527 = vadd.f32 0.0, %v1526
    %v1528 = vpop.f32.mrf.mxu0
    %v1529 = vadd.f32 0.0, %v1528
    %1530 = vdwg.mxu0
    %1531 = vmatprep.subr.mxu0 %v437
    %1532 = vmatpush1.msra.mxu0 %v436
    %1533 = vmatprep.subr.mxu0 %v433
    %1534 = vmatpush1.msra.mxu0 %v432
    %1535 = vmatprep.subr.mxu0 %v429
    %1536 = vmatpush1.msra.mxu0 %v428
    %1537 = vmatprep.subr.mxu0 %v425
    %1538 = vmatpush1.msra.mxu0 %v424
    %1539 = vmatprep.subr.mxu0 %v421
    %1540 = vmatpush1.msra.mxu0 %v420
    %1541 = vmatprep.subr.mxu0 %v417
    %1542 = vmatpush1.msra.mxu0 %v416
    %1543 = vmatprep.subr.mxu0 %v413
    %1544 = vmatpush1.msra.mxu0 %v412
    %1545 = vmatprep.subr.mxu0 %v409
    %1546 = vmatpush1.msra.mxu0 %v408
    %1547 = vmatprep.subr.mxu0 %v405
    %1548 = vmatpush1.msra.mxu0 %v404
    %1549 = vmatprep.subr.mxu0 %v401
    %1550 = vmatpush1.msra.mxu0 %v400
    %1551 = vmatprep.subr.mxu0 %v397
    %1552 = vmatpush1.msra.mxu0 %v396
    %1553 = vmatprep.subr.mxu0 %v393
    %1554 = vmatpush1.msra.mxu0 %v392
    %1555 = vmatprep.subr.mxu0 %v389
    %1556 = vmatpush1.msra.mxu0 %v388
    %1557 = vmatprep.subr.mxu0 %v385
    %1558 = vmatpush1.msra.mxu0 %v384
    %1559 = vmatprep.subr.mxu0 %v381
    %1560 = vmatpush1.msra.mxu0 %v380
    %1561 = vmatprep.subr.mxu0 %v377
    %1562 = vmatpush1.msra.mxu0 %v376
    %1563 = vmatprep.subr.mxu0 0.0
    %1564 = vmatpush2.msra.mxu0 0.0
    %1565 = vmatprep.subr.mxu0 0.0
    %1566 = vmatpush2.msra.mxu0 0.0
    %1567 = vmatprep.subr.mxu0 0.0
    %1568 = vmatpush2.msra.mxu0 0.0
    %1569 = vmatprep.subr.mxu0 0.0
    %1570 = vmatpush2.msra.mxu0 0.0
    %1571 = vmatprep.subr.mxu0 0.0
    %1572 = vmatpush2.msra.mxu0 0.0
    %1573 = vmatprep.subr.mxu0 0.0
    %1574 = vmatpush2.msra.mxu0 0.0
    %1575 = vmatprep.subr.mxu0 0.0
    %1576 = vmatpush2.msra.mxu0 0.0
    %1577 = vmatprep.subr.mxu0 0.0
    %1578 = vmatpush2.msra.mxu0 0.0
    %1579 = vmatprep.subr.mxu0 0.0
    %1580 = vmatpush2.msra.mxu0 0.0
    %1581 = vmatprep.subr.mxu0 0.0
    %1582 = vmatpush2.msra.mxu0 0.0
    %1583 = vmatprep.subr.mxu0 0.0
    %1584 = vmatpush2.msra.mxu0 0.0
    %1585 = vmatprep.subr.mxu0 0.0
    %1586 = vmatpush2.msra.mxu0 0.0
    %1587 = vmatprep.subr.mxu0 0.0
    %1588 = vmatpush2.msra.mxu0 0.0
    %1589 = vmatprep.subr.mxu0 0.0
    %1590 = vmatpush2.msra.mxu0 0.0
    %1591 = vmatprep.subr.mxu0 0.0
    %1592 = vmatpush2.msra.mxu0 0.0
    %1593 = vmatprep.subr.mxu0 0.0
    %1594 = vmatpush2.msra.mxu0 0.0
    %1595 = vmatprep.mubr.f32.mxu0 0.0
    %1596 = vmatmul.mubr.f32.gmra.mxu0 %v1459
    %v1597 = vpop.f32.mrf.mxu0
    %v1598 = vadd.f32 0.0, %v1597
    %v1599 = vpop.f32.mrf.mxu0
    %v1600 = vadd.f32 0.0, %v1599
    %1601 = vdwg.mxu0
    %v1602 = vadd.f32 %v251, %v1527
    %v1603 = vadd.f32 %v253, %v1529
    %v1604 = vadd.f32 %v364, %v1598
    %v1605 = vadd.f32 %v366, %v1600
    %v1606 = vxor.u32 %v1602, 2147483648
    %v1607 = vxor.u32 %v1603, 2147483648
    %v1608 = vxor.u32 %v1604, 2147483648
    %v1609 = vmul.f32 %v1606, 1.442695
    %v1610 = vpow.pop %v1609
    %v1611 = vmul.f32 %v1607, 1.442695
    %v1612 = vpow.pop %v1611
    %v1613 = vmul.f32 %v1608, 1.442695
    %v1614 = vpow.pop %v1613
    %v1615 = vadd.f32 %v1610, 1.0
    %v1616 = vadd.f32 %v1612, 1.0
    %v1617 = vadd.f32 %v1614, 1.0
    %v1618 = vrcp.pop %v1615
    %v1619 = vmul.f32 1.0, %v1618
    %v1620 = vrcp.pop %v1616
    %v1621 = vmul.f32 1.0, %v1620
    %v1622 = vrcp.pop %v1617
    %v1623 = vmul.f32 1.0, %v1622
    %v1624 = vtanh.pop %v1605
    %v1625 = vmul.f32 %v1621, %v1457
    %v1626 = vmul.f32 %v1619, %v1624
    %v1627 = vadd.f32 %v1625, %v1626
    %v1628 = vtanh.pop %v1627
    %v1629 = vmul.f32 %v1623, %v1628
    %1630 = vmatprep.subr.mxu0 %v435
    %1631 = vmatpush1.msra.mxu0 %v434
    %1632 = vmatprep.subr.mxu0 %v431
    %1633 = vmatpush1.msra.mxu0 %v430
    %1634 = vmatprep.subr.mxu0 %v427
    %1635 = vmatpush1.msra.mxu0 %v426
    %1636 = vmatprep.subr.mxu0 %v423
    %1637 = vmatpush1.msra.mxu0 %v422
    %1638 = vmatprep.subr.mxu0 %v419
    %1639 = vmatpush1.msra.mxu0 %v418
    %1640 = vmatprep.subr.mxu0 %v415
    %1641 = vmatpush1.msra.mxu0 %v414
    %1642 = vmatprep.subr.mxu0 %v411
    %1643 = vmatpush1.msra.mxu0 %v410
    %1644 = vmatprep.subr.mxu0 %v407
    %1645 = vmatpush1.msra.mxu0 %v406
    %1646 = vmatprep.subr.mxu0 %v403
    %1647 = vmatpush1.msra.mxu0 %v402
    %1648 = vmatprep.subr.mxu0 %v399
    %1649 = vmatpush1.msra.mxu0 %v398
    %1650 = vmatprep.subr.mxu0 %v395
    %1651 = vmatpush1.msra.mxu0 %v394
    %1652 = vmatprep.subr.mxu0 %v391
    %1653 = vmatpush1.msra.mxu0 %v390
    %1654 = vmatprep.subr.mxu0 %v387
    %1655 = vmatpush1.msra.mxu0 %v386
    %1656 = vmatprep.subr.mxu0 %v383
    %1657 = vmatpush1.msra.mxu0 %v382
    %1658 = vmatprep.subr.mxu0 %v379
    %1659 = vmatpush1.msra.mxu0 %v378
    %1660 = vmatprep.subr.mxu0 %v375
    %1661 = vmatpush1.msra.mxu0 %v374
    %1662 = vmatprep.subr.mxu0 0.0
    %1663 = vmatpush2.msra.mxu0 0.0
    %1664 = vmatprep.subr.mxu0 0.0
    %1665 = vmatpush2.msra.mxu0 0.0
    %1666 = vmatprep.subr.mxu0 0.0
    %1667 = vmatpush2.msra.mxu0 0.0
    %1668 = vmatprep.subr.mxu0 0.0
    %1669 = vmatpush2.msra.mxu0 0.0
    %1670 = vmatprep.subr.mxu0 0.0
    %1671 = vmatpush2.msra.mxu0 0.0
    %1672 = vmatprep.subr.mxu0 0.0
    %1673 = vmatpush2.msra.mxu0 0.0
    %1674 = vmatprep.subr.mxu0 0.0
    %1675 = vmatpush2.msra.mxu0 0.0
    %1676 = vmatprep.subr.mxu0 0.0
    %1677 = vmatpush2.msra.mxu0 0.0
    %1678 = vmatprep.subr.mxu0 0.0
    %1679 = vmatpush2.msra.mxu0 0.0
    %1680 = vmatprep.subr.mxu0 0.0
    %1681 = vmatpush2.msra.mxu0 0.0
    %1682 = vmatprep.subr.mxu0 0.0
    %1683 = vmatpush2.msra.mxu0 0.0
    %1684 = vmatprep.subr.mxu0 0.0
    %1685 = vmatpush2.msra.mxu0 0.0
    %1686 = vmatprep.subr.mxu0 0.0
    %1687 = vmatpush2.msra.mxu0 0.0
    %1688 = vmatprep.subr.mxu0 0.0
    %1689 = vmatpush2.msra.mxu0 0.0
    %1690 = vmatprep.subr.mxu0 0.0
    %1691 = vmatpush2.msra.mxu0 0.0
    %1692 = vmatprep.subr.mxu0 0.0
    %1693 = vmatpush2.msra.mxu0 0.0
    %1694 = vmatprep.mubr.f32.mxu0 0.0
    %1695 = vmatmul.mubr.f32.gmra.mxu0 %v1629
    %v1696 = vpop.f32.mrf.mxu0
    %v1697 = vadd.f32 0.0, %v1696
    %v1698 = vpop.f32.mrf.mxu0
    %v1699 = vadd.f32 0.0, %v1698
    %1700 = vdwg.mxu0
    %1701 = vmatprep.subr.mxu0 %v437
    %1702 = vmatpush1.msra.mxu0 %v436
    %1703 = vmatprep.subr.mxu0 %v433
    %1704 = vmatpush1.msra.mxu0 %v432
    %1705 = vmatprep.subr.mxu0 %v429
    %1706 = vmatpush1.msra.mxu0 %v428
    %1707 = vmatprep.subr.mxu0 %v425
    %1708 = vmatpush1.msra.mxu0 %v424
    %1709 = vmatprep.subr.mxu0 %v421
    %1710 = vmatpush1.msra.mxu0 %v420
    %1711 = vmatprep.subr.mxu0 %v417
    %1712 = vmatpush1.msra.mxu0 %v416
    %1713 = vmatprep.subr.mxu0 %v413
    %1714 = vmatpush1.msra.mxu0 %v412
    %1715 = vmatprep.subr.mxu0 %v409
    %1716 = vmatpush1.msra.mxu0 %v408
    %1717 = vmatprep.subr.mxu0 %v405
    %1718 = vmatpush1.msra.mxu0 %v404
    %1719 = vmatprep.subr.mxu0 %v401
    %1720 = vmatpush1.msra.mxu0 %v400
    %1721 = vmatprep.subr.mxu0 %v397
    %1722 = vmatpush1.msra.mxu0 %v396
    %1723 = vmatprep.subr.mxu0 %v393
    %1724 = vmatpush1.msra.mxu0 %v392
    %1725 = vmatprep.subr.mxu0 %v389
    %1726 = vmatpush1.msra.mxu0 %v388
    %1727 = vmatprep.subr.mxu0 %v385
    %1728 = vmatpush1.msra.mxu0 %v384
    %1729 = vmatprep.subr.mxu0 %v381
    %1730 = vmatpush1.msra.mxu0 %v380
    %1731 = vmatprep.subr.mxu0 %v377
    %1732 = vmatpush1.msra.mxu0 %v376
    %1733 = vmatprep.subr.mxu0 0.0
    %1734 = vmatpush2.msra.mxu0 0.0
    %1735 = vmatprep.subr.mxu0 0.0
    %1736 = vmatpush2.msra.mxu0 0.0
    %1737 = vmatprep.subr.mxu0 0.0
    %1738 = vmatpush2.msra.mxu0 0.0
    %1739 = vmatprep.subr.mxu0 0.0
    %1740 = vmatpush2.msra.mxu0 0.0
    %1741 = vmatprep.subr.mxu0 0.0
    %1742 = vmatpush2.msra.mxu0 0.0
    %1743 = vmatprep.subr.mxu0 0.0
    %1744 = vmatpush2.msra.mxu0 0.0
    %1745 = vmatprep.subr.mxu0 0.0
    %1746 = vmatpush2.msra.mxu0 0.0
    %1747 = vmatprep.subr.mxu0 0.0
    %1748 = vmatpush2.msra.mxu0 0.0
    %1749 = vmatprep.subr.mxu0 0.0
    %1750 = vmatpush2.msra.mxu0 0.0
    %1751 = vmatprep.subr.mxu0 0.0
    %1752 = vmatpush2.msra.mxu0 0.0
    %1753 = vmatprep.subr.mxu0 0.0
    %1754 = vmatpush2.msra.mxu0 0.0
    %1755 = vmatprep.subr.mxu0 0.0
    %1756 = vmatpush2.msra.mxu0 0.0
    %1757 = vmatprep.subr.mxu0 0.0
    %1758 = vmatpush2.msra.mxu0 0.0
    %1759 = vmatprep.subr.mxu0 0.0
    %1760 = vmatpush2.msra.mxu0 0.0
    %1761 = vmatprep.subr.mxu0 0.0
    %1762 = vmatpush2.msra.mxu0 0.0
    %1763 = vmatprep.subr.mxu0 0.0
    %1764 = vmatpush2.msra.mxu0 0.0
    %1765 = vmatprep.mubr.f32.mxu0 0.0
    %1766 = vmatmul.mubr.f32.gmra.mxu0 %v1629
    %v1767 = vpop.f32.mrf.mxu0
    %v1768 = vadd.f32 0.0, %v1767
    %v1769 = vpop.f32.mrf.mxu0
    %v1770 = vadd.f32 0.0, %v1769
    %1771 = vdwg.mxu0
    %v1772 = vadd.f32 %v257, %v1697
    %v1773 = vadd.f32 %v259, %v1699
    %v1774 = vadd.f32 %v370, %v1768
    %v1775 = vadd.f32 %v372, %v1770
    %v1776 = vxor.u32 %v1772, 2147483648
    %v1777 = vxor.u32 %v1773, 2147483648
    %v1778 = vxor.u32 %v1774, 2147483648
    %v1779 = vmul.f32 %v1776, 1.442695
    %v1780 = vpow.pop %v1779
    %v1781 = vmul.f32 %v1777, 1.442695
    %v1782 = vpow.pop %v1781
    %v1783 = vmul.f32 %v1778, 1.442695
    %v1784 = vpow.pop %v1783
    %v1785 = vadd.f32 %v1780, 1.0
    %v1786 = vadd.f32 %v1782, 1.0
    %v1787 = vadd.f32 %v1784, 1.0
    %v1788 = vrcp.pop %v1785
    %v1789 = vmul.f32 1.0, %v1788
    %v1790 = vrcp.pop %v1786
    %v1791 = vmul.f32 1.0, %v1790
    %v1792 = vrcp.pop %v1787
    %v1793 = vmul.f32 1.0, %v1792
    %v1794 = vtanh.pop %v1775
    %v1795 = vmul.f32 %v1791, %v1627
    %v1796 = vmul.f32 %v1789, %v1794
    %v1797 = vadd.f32 %v1795, %v1796
    %v1798 = vtanh.pop %v1797
    %v1799 = vmul.f32 %v1793, %v1798
    %1800 = vst [vmem:[#allocation2] sm:$0xff] %v1799
    %1801 = vst [vmem:[#allocation3] sm:$0xff] %v1797
    // Predicated region
    $region46: #{tpu_custom_call.1} parent=1 // pred_check
      %p1802 = pneg %p79
    $region47: #{tpu_custom_call.1} parent=1 // pred_check_branch
      %1804 = sbr.rel (%p1802) target = $region49
    $region48: #{tpu_custom_call.1} parent=1 // pred_region
      %v1805 = vld [vmem:[#allocation10] sm:$0xff]
      %v1806 = vld [vmem:[#allocation10 + $0x8] sm:$0xff]
      %v1807 = vld [vmem:[#allocation10 + $0x10] sm:$0xff]
      %v1808 = vld [vmem:[#allocation10 + $0x18] sm:$0xff]
      %v1809 = vld [vmem:[#allocation10 + $0x20] sm:$0xff]
      %v1810 = vld [vmem:[#allocation10 + $0x28] sm:$0xff]
      %v1811 = vld [vmem:[#allocation10 + $0x30] sm:$0xff]
      %v1812 = vld [vmem:[#allocation10 + $0x38] sm:$0xff]
      %v1813 = vld [vmem:[#allocation10 + $0x40] sm:$0xff]
      %v1814 = vld [vmem:[#allocation10 + $0x48] sm:$0xff]
      %v1815 = vld [vmem:[#allocation10 + $0x50] sm:$0xff]
      %v1816 = vld [vmem:[#allocation10 + $0x58] sm:$0xff]
      %v1817 = vld [vmem:[#allocation10 + $0x60] sm:$0xff]
      %v1818 = vld [vmem:[#allocation10 + $0x68] sm:$0xff]
      %v1819 = vld [vmem:[#allocation10 + $0x70] sm:$0xff]
      %v1820 = vld [vmem:[#allocation10 + $0x78] sm:$0xff]
      %v1821 = vld [vmem:[%s5] sm:$0x1]
      %v1823 = vlaneseq
      %v1824 = vshrl.u32 %v1823, 7
      %v1825 = vsub.s32 0, %v1824
      %v1826 = vrot.slane %v1821, %v1825
      %1828 = vmatprep.subr.mxu0 0.0
      %1829 = vmatpush1.msra.mxu0 %v1820
      %1830 = vmatprep.subr.mxu0 0.0
      %1831 = vmatpush1.msra.mxu0 %v1819
      %1832 = vmatprep.subr.mxu0 0.0
      %1833 = vmatpush1.msra.mxu0 %v1818
      %1834 = vmatprep.subr.mxu0 0.0
      %1835 = vmatpush1.msra.mxu0 %v1817
      %1836 = vmatprep.subr.mxu0 0.0
      %1837 = vmatpush1.msra.mxu0 %v1816
      %1838 = vmatprep.subr.mxu0 0.0
      %1839 = vmatpush1.msra.mxu0 %v1815
      %1840 = vmatprep.subr.mxu0 0.0
      %1841 = vmatpush1.msra.mxu0 %v1814
      %1842 = vmatprep.subr.mxu0 0.0
      %1843 = vmatpush1.msra.mxu0 %v1813
      %1844 = vmatprep.subr.mxu0 0.0
      %1845 = vmatpush1.msra.mxu0 %v1812
      %1846 = vmatprep.subr.mxu0 0.0
      %1847 = vmatpush1.msra.mxu0 %v1811
      %1848 = vmatprep.subr.mxu0 0.0
      %1849 = vmatpush1.msra.mxu0 %v1810
      %1850 = vmatprep.subr.mxu0 0.0
      %1851 = vmatpush1.msra.mxu0 %v1809
      %1852 = vmatprep.subr.mxu0 0.0
      %1853 = vmatpush1.msra.mxu0 %v1808
      %1854 = vmatprep.subr.mxu0 0.0
      %1855 = vmatpush1.msra.mxu0 %v1807
      %1856 = vmatprep.subr.mxu0 0.0
      %1857 = vmatpush1.msra.mxu0 %v1806
      %1858 = vmatprep.subr.mxu0 0.0
      %1859 = vmatpush1.msra.mxu0 %v1805
      %1860 = vmatprep.subr.mxu0 0.0
      %1861 = vmatpush2.msra.mxu0 0.0
      %1862 = vmatprep.subr.mxu0 0.0
      %1863 = vmatpush2.msra.mxu0 0.0
      %1864 = vmatprep.subr.mxu0 0.0
      %1865 = vmatpush2.msra.mxu0 0.0
      %1866 = vmatprep.subr.mxu0 0.0
      %1867 = vmatpush2.msra.mxu0 0.0
      %1868 = vmatprep.subr.mxu0 0.0
      %1869 = vmatpush2.msra.mxu0 0.0
      %1870 = vmatprep.subr.mxu0 0.0
      %1871 = vmatpush2.msra.mxu0 0.0
      %1872 = vmatprep.subr.mxu0 0.0
      %1873 = vmatpush2.msra.mxu0 0.0
      %1874 = vmatprep.subr.mxu0 0.0
      %1875 = vmatpush2.msra.mxu0 0.0
      %1876 = vmatprep.subr.mxu0 0.0
      %1877 = vmatpush2.msra.mxu0 0.0
      %1878 = vmatprep.subr.mxu0 0.0
      %1879 = vmatpush2.msra.mxu0 0.0
      %1880 = vmatprep.subr.mxu0 0.0
      %1881 = vmatpush2.msra.mxu0 0.0
      %1882 = vmatprep.subr.mxu0 0.0
      %1883 = vmatpush2.msra.mxu0 0.0
      %1884 = vmatprep.subr.mxu0 0.0
      %1885 = vmatpush2.msra.mxu0 0.0
      %1886 = vmatprep.subr.mxu0 0.0
      %1887 = vmatpush2.msra.mxu0 0.0
      %1888 = vmatprep.subr.mxu0 0.0
      %1889 = vmatpush2.msra.mxu0 0.0
      %1890 = vmatprep.subr.mxu0 0.0
      %1891 = vmatpush2.msra.mxu0 0.0
      %1892 = vmatprep.mubr.f32.mxu0 0.0
      %1893 = vmatmul.mubr.f32.gmra.mxu0 %v1799
      %v1894 = vpop.f32.mrf.mxu0
      %v1895 = vadd.f32 %v1826, %v1894
      %v1896 = vpop.f32.mrf.mxu0
      %1897 = vdwg.mxu0
      %1898 = vst [vmem:[#allocation12] sm:$0xff] %v1895
    $region49: #{tpu_custom_call.1} parent=1 // pred_fallthru
      _
    // Predicated region
    $region50: #{tpu_custom_call.1} parent=1 // pred_check
      _
    $region51: #{tpu_custom_call.1} parent=1 // pred_check_branch
      %1900 = sbr.rel (0) target = $region53
    $region52: #{tpu_custom_call.1} parent=1 // pred_region
      %s1902 = ssub.s32 128, 128
      %1903 = vsyncadd [#allocation6], %s1902
      %s1905 = sshll.u32 [#allocation12], 4
      %s1906 = int_to_ptr.vmem [resolvable:$true] %s1905
      %1908 = dma.vmem_to_hbm [thread:$0]  %s1906, 128, %s6, [#allocation6]
    $region53: #{tpu_custom_call.1} parent=1 // pred_fallthru
      _
    // Predicated region
    $region54: #{tpu_custom_call.1} parent=1 // pred_check
      _
    $region55: #{tpu_custom_call.1} parent=1 // pred_check_branch
      %1910 = sbr.rel (0) target = $region57
    $region56: #{tpu_custom_call.1} parent=1 // pred_region
      %1911 = dma.done [#allocation6], 128
    $region57: #{tpu_custom_call.1} parent=1 // pred_fallthru
      _
    %1912 = vsyncpa [#allocation5], 1
    %1913 = vsyncpa [#allocation8], 1
    %1914 = vsyncpa [#allocation11], 1
    %1915 = vsyncpa [#allocation6], 1

</llo_original>
